<compile_context>
chip_gen: v7x
topology: tpu7x:2x2x1
jax: 0.10.0
libtpu: 0.0.40
codegen_flags: <defaults>
</compile_context>

<pallas_src>
import functools

import jax
import jax.numpy as jnp
from jax.experimental import pallas as pl
from jax.experimental.pallas import tpu as pltpu


# ---------------------------------------------------------------------------
# small helpers
# ---------------------------------------------------------------------------
def _round_up(v, m):
    return ((v + m - 1) // m) * m


def _vmem_limit_bytes():
    """Generation-aware VMEM budget (3/4 of physical, capped at 100 MiB)."""
    cap = None
    try:
        info = pltpu.get_tpu_info()
        for name in ("vmem_capacity_bytes", "vmem_bytes", "vmem_size_bytes"):
            if hasattr(info, name):
                cap = int(getattr(info, name))
                break
    except Exception:
        cap = None
    if not cap or cap <= 0:
        cap = 64 * 1024 * 1024          # v7x physical size: safe floor everywhere
    return min((cap * 3) // 4, 100 * 1024 * 1024)


# ---------------------------------------------------------------------------
# Fused per-graph forward kernel (grid = (num_graphs,), fully parallel)
# ---------------------------------------------------------------------------
def _actor_graph_kernel(
    cloc_ref,                                   # scalar prefetch: local center idx (G,)
    x_ref, adj_ref, hb_ref, rowsh_ref, rowsh2_ref,
    w0_ref, gew1_ref, gew2_ref, gw1b_ref, gw2_ref, w1c_ref, w1e_ref,
    p_ref, s_ref, lp_ref, x0_ref,
    *, eps_gin, cities,
):
    f32 = jnp.float32
    gidx = pl.program_id(0)

    x = x_ref[0]                                # (C, F)
    adj = adj_ref[0]                            # (C, C) bf16, exact 0/1
    head_bias = hb_ref[0]                       # (1, C)  = b2 + x@w2_x - mask penalty

    rows = rowsh_ref[...]                       # (7, HP)
    b0, bn_s, bn_b = rows[0:1], rows[1:2], rows[2:3]
    geb1, geb2 = rows[3:4], rows[4:5]
    b1, w2h = rows[5:6], rows[6:7]
    rows2 = rowsh2_ref[...]                     # (3, H2P)
    gb1, gb2, ie_row = rows2[0:1], rows2[1:2], rows2[2:3]

    # ---- linear0 + BatchNorm (batch stats pre-folded into scale/shift) -----
    y = jnp.dot(x, w0_ref[...], preferred_element_type=f32) + b0
    y = y * bn_s + bn_b                                               # (C, HP)

    # ---- GIN_embed:  MLP((1+eps)*y + A@y); bf16 neighbor-sum on the MXU ----
    nsum = jnp.dot(adj, y.astype(jnp.bfloat16), preferred_element_type=f32)
    agg = (1.0 + eps_gin) * y + nsum
    h = jnp.maximum(
        jnp.dot(agg, gew1_ref[...], preferred_element_type=f32) + geb1, 0.0)
    x0 = jnp.dot(h, gew2_ref[...], preferred_element_type=f32) + geb2  # (C, HP)
    x0_ref[0] = x0                                                     # lane-dense store

    # ---- GIN over concat([initial_embed_rep, x0]) with the concat folded ---
    # concat-input @ W1 == (1 + eps + deg_i) * (initial_embed @ W1_top)
    #                      + ((1+eps)*x0 + A@x0) @ W1_bot
    deg = jnp.sum(adj.astype(f32), axis=1, keepdims=True)              # (C, 1)
    nsum0 = jnp.dot(adj, x0.astype(jnp.bfloat16), preferred_element_type=f32)
    agg0 = (1.0 + eps_gin) * x0 + nsum0
    h1 = jnp.maximum(
        ((1.0 + eps_gin) + deg) * ie_row
        + jnp.dot(agg0, gw1b_ref[...], preferred_element_type=f32) + gb1, 0.0)
    enc = jnp.dot(h1, gw2_ref[...], preferred_element_type=f32) + gb2   # (C, H2P)

    # ---- linear1: gather this graph's center row, broadcast-add to tile ----
    cl = cloc_ref[gidx]
    row_ids = jax.lax.broadcasted_iota(jnp.int32, (cities, 1), 0)
    center = jnp.sum(jnp.where(row_ids == cl, enc, 0.0),
                     axis=0, keepdims=True)                            # (1, H2P)
    x1 = jnp.maximum(
        jnp.dot(center, w1c_ref[...], preferred_element_type=f32)      # (1, HP) bcast
        + jnp.dot(enc, w1e_ref[...], preferred_element_type=f32)
        + b1, 0.0)                                                     # (C, HP)

    # ---- linear2 head: logits as a lane row (1, C) --------------------------
    lg = jnp.dot(w2h, x1.T, preferred_element_type=f32) + head_bias    # (1, C)

    # ---- per-graph softmax / argmax / log-prob -------------------------------
    m = jnp.max(lg, axis=1, keepdims=True)
    e = jnp.exp(lg - m)
    ssum = jnp.sum(e, axis=1, keepdims=True)
    p_ref[0] = e / ssum

    lane_ids = jax.lax.broadcasted_iota(jnp.int32, (1, cities), 1)
    s_ref[0] = jnp.min(jnp.where(lg == m, lane_ids, cities),
                       axis=1, keepdims=True)                          # local argmax
    lp_ref[0] = -jnp.log(ssum)        # == log p[argmax] = max - logsumexp


# ---------------------------------------------------------------------------
# Parameter initialisation (deterministic, PyTorch-Linear-style uniform init)
# ---------------------------------------------------------------------------
def _init_linear(key, fan_in, fan_out):
    k1, k2 = jax.random.split(key)
    bound = 1.0 / jnp.sqrt(jnp.float32(fan_in))
    w = jax.random.uniform(k1, (fan_in, fan_out), jnp.float32, -bound, bound)
    b = jax.random.uniform(k2, (fan_out,), jnp.float32, -bound, bound)
    return w, b


def init_actor_params(key, num_features, num_hidden):
    keys = jax.random.split(key, 8)
    h, f = num_hidden, num_features
    w0, b0 = _init_linear(keys[0], f, h)                       # linear0
    ge_w1, ge_b1 = _init_linear(keys[1], h, h)                 # GIN_embed MLP
    ge_w2, ge_b2 = _init_linear(keys[2], h, h)
    g_w1, g_b1 = _init_linear(keys[3], 2 * h, 2 * h)           # GIN MLP
    g_w2, g_b2 = _init_linear(keys[4], 2 * h, 2 * h)
    w1, b1 = _init_linear(keys[5], 4 * h, h)                   # linear1
    w2, b2 = _init_linear(keys[6], h + f, 1)                   # linear2
    initial_embed = jax.random.normal(keys[7], (h,), jnp.float32)
    return {
        "w0": w0, "b0": b0,
        "bn_g": jnp.ones((h,), jnp.float32),
        "bn_b": jnp.zeros((h,), jnp.float32),
        "gin_embed": (ge_w1, ge_b1, ge_w2, ge_b2),
        "gin": (g_w1, g_b1, g_w2, g_b2),
        "w1": w1, "b1": b1,
        "w2": w2, "b2": b2,
        "initial_embed": initial_embed,
    }


# ---------------------------------------------------------------------------
# Forward pass: one per-graph-parallel pallas_call
# ---------------------------------------------------------------------------
def actor_forward(params, x, adj, mask, center_node_index, graph_id_index,
                  num_graphs, inf=1e6, eps_gin=0.0, bn_eps=1e-5):
    n, f = x.shape
    g = num_graphs
    cities = n // g
    h = params["w0"].shape[1]
    hp = _round_up(h, 128)            # hidden padded to 128 lanes
    h2p = _round_up(2 * h, 128)       # 2*hidden padded to 128 lanes

    ge_w1, ge_b1, ge_w2, ge_b2 = params["gin_embed"]
    g_w1, g_b1, g_w2, g_b2 = params["gin"]

    # BatchNorm(track_running_stats=False) always uses batch statistics (both
    # train and eval).  They are the only cross-graph coupling, so fold them
    # into per-channel scale/shift here; the Pallas grid stays fully parallel.
    y_all = x @ params["w0"] + params["b0"]
    mean = jnp.mean(y_all, axis=0)
    var = jnp.mean((y_all - mean) ** 2, axis=0)          # biased, like BN
    bn_scale = params["bn_g"] * jax.lax.rsqrt(var + bn_eps)
    bn_shift = params["bn_b"] - mean * bn_scale

    # ---- pad hidden dims to 128 lanes (zero-padding is exact end-to-end) ----
    def padv(v, w): return jnp.pad(v, (0, w - v.shape[0]))
    def padm(a, r, c): return jnp.pad(a, ((0, r - a.shape[0]), (0, c - a.shape[1])))

    w0p = padm(params["w0"], f, hp)                      # (F,  HP)
    gew1p = padm(ge_w1, hp, hp)                          # (HP, HP)
    gew2p = padm(ge_w2, hp, hp)                          # (HP, HP)
    gw1bp = padm(g_w1[h:, :], hp, h2p)                   # (HP, H2P) -- bottom half
    gw2p = padm(g_w2, h2p, h2p)                          # (H2P,H2P)
    w1cp = padm(params["w1"][:2 * h, :], h2p, hp)        # (H2P,HP)
    w1ep = padm(params["w1"][2 * h:, :], h2p, hp)        # (H2P,HP)

    # initial_embed branch of the first GIN layer is data-independent: one row
    ie_row = params["initial_embed"].reshape(1, h) @ g_w1[:h, :]    # (1, 2H)

    # pack the small per-channel vectors into two arrays (fewer DMA descriptors)
    rowsh = jnp.stack([
        padv(params["b0"], hp), padv(bn_scale, hp), padv(bn_shift, hp),
        padv(ge_b1, hp), padv(ge_b2, hp), padv(params["b1"], hp),
        padv(params["w2"][f:, 0], hp),
    ])                                                    # (7, HP)
    rowsh2 = jnp.stack([padv(g_b1, h2p), padv(g_b2, h2p),
                        padv(ie_row[0], h2p)])            # (3, H2P)

    # per-graph tiles: x (G,C,F); block-diagonal adjacency (G,C,C) in bf16
    # (PyG batching guarantees no cross-graph edges; off-diagonal blocks dropped)
    x3 = x.reshape(g, cities, f)
    adj3 = adj.reshape(g, cities, g, cities)[jnp.arange(g), :, jnp.arange(g), :]
    adj3 = adj3.astype(jnp.bfloat16)                      # exact for 0/1 edges

    # linear2 head bias: b2 + data.x @ w2_x - mask penalty (input-only terms)
    xw2 = (x @ params["w2"][:f, :]).reshape(g, cities)
    mask_gc = mask.reshape(g, cities).astype(jnp.float32)
    headb = (params["b2"].reshape(1, 1) + xw2 - (1.0 - mask_gc) * inf)[:, None, :]

    # per-graph local index of the center node (scalar-prefetched to SMEM)
    center_local = (center_node_index.astype(jnp.int32) % cities)     # (G,)

    grid_spec = pltpu.PrefetchScalarGridSpec(
        num_scalar_prefetch=1,
        grid=(g,),
        in_specs=[
            pl.BlockSpec((1, cities, f), lambda i, cl: (i, 0, 0)),        # x
            pl.BlockSpec((1, cities, cities), lambda i, cl: (i, 0, 0)),   # adj block
            pl.BlockSpec((1, 1, cities), lambda i, cl: (i, 0, 0)),        # head bias
            pl.BlockSpec((7, hp), lambda i, cl: (0, 0)),                  # packed rows
            pl.BlockSpec((3, h2p), lambda i, cl: (0, 0)),                 # packed rows2
            pl.BlockSpec((f, hp), lambda i, cl: (0, 0)),                  # w0
            pl.BlockSpec((hp, hp), lambda i, cl: (0, 0)),                 # gin_embed w1
            pl.BlockSpec((hp, hp), lambda i, cl: (0, 0)),                 # gin_embed w2
            pl.BlockSpec((hp, h2p), lambda i, cl: (0, 0)),                # gin w1 (bot)
            pl.BlockSpec((h2p, h2p), lambda i, cl: (0, 0)),               # gin w2
            pl.BlockSpec((h2p, hp), lambda i, cl: (0, 0)),                # linear1 (center)
            pl.BlockSpec((h2p, hp), lambda i, cl: (0, 0)),                # linear1 (enc)
        ],
        out_specs=(
            pl.BlockSpec((1, 1, cities), lambda i, cl: (i, 0, 0)),        # probs
            pl.BlockSpec((1, 1, 1), lambda i, cl: (i, 0, 0)),             # sample
            pl.BlockSpec((1, 1, 1), lambda i, cl: (i, 0, 0)),             # log prob
            pl.BlockSpec((1, cities, hp), lambda i, cl: (i, 0, 0)),       # x0 (padded)
        ),
    )
    out_shape = (
        jax.ShapeDtypeStruct((g, 1, cities), jnp.float32),
        jax.ShapeDtypeStruct((g, 1, 1), jnp.int32),
        jax.ShapeDtypeStruct((g, 1, 1), jnp.float32),
        jax.ShapeDtypeStruct((g, cities, hp), jnp.float32),
    )

    probs3, samp3, logp3, x0p = pl.pallas_call(
        functools.partial(_actor_graph_kernel, eps_gin=eps_gin, cities=cities),
        grid_spec=grid_spec,
        out_shape=out_shape,
        compiler_params=pltpu.CompilerParams(
            dimension_semantics=("parallel",),          # v7x: 2 TCs split graphs
            vmem_limit_bytes=_vmem_limit_bytes()),
    )(center_local, x3, adj3, headb, rowsh, rowsh2,
      w0p, gew1p, gew2p, gw1bp, gw2p, w1cp, w1ep)

    sample = samp3.reshape(g) + graph_id_index.astype(jnp.int32)
    log_action = logp3.reshape(g)
    x0 = x0p[:, :, :h].reshape(n, h)                     # strip lane padding
    probs = probs3.reshape(g, cities)
    return sample, log_action, x0, probs


# ---------------------------------------------------------------------------
# Main
# ---------------------------------------------------------------------------
if __name__ == "__main__":
    num_graphs = 2
    cities = 8
    num_features = 4
    num_hidden = 32
    n = num_graphs * cities

    key = jax.random.PRNGKey(0)
    k_param, k_x = jax.random.split(key)

    params = init_actor_params(k_param, num_features, num_hidden)

    # node features (e.g. 2D coords + extras), concatenated over graphs
    x = jax.random.normal(k_x, (n, num_features), jnp.float32)

    # dense adjacency: a ring (tour) inside each graph, no cross-graph edges
    adj = jnp.zeros((n, n), jnp.float32)
    for gi in range(num_graphs):
        base = gi * cities
        for i in range(cities):
            a = base + i
            b = base + (i + 1) % cities
            adj = adj.at[a, b].set(1.0).at[b, a].set(1.0)

    # mask: node 0 of each graph (the current node) is unavailable
    mask = jnp.ones((n, 1), dtype=bool)
    for gi in range(num_graphs):
        mask = mask.at[gi * cities, 0].set(False)

    center_node_index = jnp.array([gi * cities for gi in range(num_graphs)],
                                  dtype=jnp.int32)
    graph_id_index = jnp.array([gi * cities for gi in range(num_graphs)],
                               dtype=jnp.int32)

    fwd = jax.jit(functools.partial(actor_forward, num_graphs=num_graphs))
    sample, log_action, x0, probs = fwd(params, x, adj, mask,
                                        center_node_index, graph_id_index)
    jax.block_until_ready((sample, log_action, x0, probs))

    assert sample.shape == (num_graphs,)
    assert log_action.shape == (num_graphs,)
    assert x0.shape == (n, num_hidden)
    assert bool(jnp.all(jnp.isfinite(log_action)))
    assert bool(jnp.allclose(jnp.sum(probs, axis=1), 1.0, atol=1e-5))
    # masked node (index 0 of each graph) must never be selected
    assert bool(jnp.all((sample - graph_id_index) != 0))

    print("KERNEL_OK")
</pallas_src>

<mosaic_0001>
module attributes {stable_mosaic.version = 11 : i64} {
  func.func @_actor_graph_kernel(%arg0: i32, %arg1: memref<2xi32, #tpu.memory_space<smem>>, %arg2: memref<1x8x4xf32, #tpu.memory_space<vmem>>, %arg3: memref<1x8x8xbf16, #tpu.memory_space<vmem>>, %arg4: memref<1x1x8xf32, #tpu.memory_space<vmem>>, %arg5: memref<7x128xf32, #tpu.memory_space<vmem>>, %arg6: memref<3x128xf32, #tpu.memory_space<vmem>>, %arg7: memref<4x128xf32, #tpu.memory_space<vmem>>, %arg8: memref<128x128xf32, #tpu.memory_space<vmem>>, %arg9: memref<128x128xf32, #tpu.memory_space<vmem>>, %arg10: memref<128x128xf32, #tpu.memory_space<vmem>>, %arg11: memref<128x128xf32, #tpu.memory_space<vmem>>, %arg12: memref<128x128xf32, #tpu.memory_space<vmem>>, %arg13: memref<128x128xf32, #tpu.memory_space<vmem>>, %arg14: memref<1x1x8xf32, #tpu.memory_space<vmem>>, %arg15: memref<1x1x1xi32, #tpu.memory_space<vmem>>, %arg16: memref<1x1x1xf32, #tpu.memory_space<vmem>>, %arg17: memref<1x8x128xf32, #tpu.memory_space<vmem>>) attributes {dimension_semantics = [#tpu.dimension_semantics<parallel>], iteration_bounds = array<i64: 2>, scalar_prefetch = 1 : i64, scratch_operands = 0 : i64, tpu.core_type = #tpu.core_type<tc>, window_params = [{transform_indices = @transform_0, window_bounds = array<i64: 1, 8, 4>}, {transform_indices = @transform_1, window_bounds = array<i64: 1, 8, 8>}, {transform_indices = @transform_2, window_bounds = array<i64: 1, 1, 8>}, {pipeline_mode = #tpu.pipeline_mode<synchronous>, transform_indices = @transform_3, window_bounds = array<i64: 7, 128>}, {pipeline_mode = #tpu.pipeline_mode<synchronous>, transform_indices = @transform_4, window_bounds = array<i64: 3, 128>}, {pipeline_mode = #tpu.pipeline_mode<synchronous>, transform_indices = @transform_5, window_bounds = array<i64: 4, 128>}, {pipeline_mode = #tpu.pipeline_mode<synchronous>, transform_indices = @transform_6, window_bounds = array<i64: 128, 128>}, {pipeline_mode = #tpu.pipeline_mode<synchronous>, transform_indices = @transform_7, window_bounds = array<i64: 128, 128>}, {pipeline_mode = #tpu.pipeline_mode<synchronous>, transform_indices = @transform_8, window_bounds = array<i64: 128, 128>}, {pipeline_mode = #tpu.pipeline_mode<synchronous>, transform_indices = @transform_9, window_bounds = array<i64: 128, 128>}, {pipeline_mode = #tpu.pipeline_mode<synchronous>, transform_indices = @transform_10, window_bounds = array<i64: 128, 128>}, {pipeline_mode = #tpu.pipeline_mode<synchronous>, transform_indices = @transform_11, window_bounds = array<i64: 128, 128>}, {transform_indices = @transform_12, window_bounds = array<i64: 1, 1, 8>}, {transform_indices = @transform_13, window_bounds = array<i64: 1, 1, 1>}, {transform_indices = @transform_14, window_bounds = array<i64: 1, 1, 1>}, {transform_indices = @transform_15, window_bounds = array<i64: 1, 8, 128>}]} {
    %c0 = arith.constant 0 : index
    %c0_0 = arith.constant 0 : index
    %c0_1 = arith.constant 0 : index
    %0 = vector.load %arg2[%c0, %c0_0, %c0_1] : memref<1x8x4xf32, #tpu.memory_space<vmem>>, vector<1x8x4xf32>
    %1 = vector.shape_cast %0 : vector<1x8x4xf32> to vector<8x4xf32>
    %c0_2 = arith.constant 0 : index
    %c0_3 = arith.constant 0 : index
    %c0_4 = arith.constant 0 : index
    %2 = vector.load %arg3[%c0_2, %c0_3, %c0_4] : memref<1x8x8xbf16, #tpu.memory_space<vmem>>, vector<1x8x8xbf16>
    %3 = vector.shape_cast %2 : vector<1x8x8xbf16> to vector<8x8xbf16>
    %c0_5 = arith.constant 0 : index
    %c0_6 = arith.constant 0 : index
    %c0_7 = arith.constant 0 : index
    %4 = vector.load %arg4[%c0_5, %c0_6, %c0_7] : memref<1x1x8xf32, #tpu.memory_space<vmem>>, vector<1x1x8xf32>
    %5 = vector.shape_cast %4 : vector<1x1x8xf32> to vector<1x8xf32>
    %c0_8 = arith.constant 0 : index
    %c0_9 = arith.constant 0 : index
    %6 = vector.load %arg5[%c0_8, %c0_9] : memref<7x128xf32, #tpu.memory_space<vmem>>, vector<7x128xf32>
    %7 = vector.extract_strided_slice %6 {offsets = [0, 0], sizes = [1, 128], strides = [1, 1]} : vector<7x128xf32> to vector<1x128xf32>
    %8 = vector.extract_strided_slice %6 {offsets = [1, 0], sizes = [1, 128], strides = [1, 1]} : vector<7x128xf32> to vector<1x128xf32>
    %9 = vector.extract_strided_slice %6 {offsets = [2, 0], sizes = [1, 128], strides = [1, 1]} : vector<7x128xf32> to vector<1x128xf32>
    %10 = vector.extract_strided_slice %6 {offsets = [3, 0], sizes = [1, 128], strides = [1, 1]} : vector<7x128xf32> to vector<1x128xf32>
    %11 = vector.extract_strided_slice %6 {offsets = [4, 0], sizes = [1, 128], strides = [1, 1]} : vector<7x128xf32> to vector<1x128xf32>
    %12 = vector.extract_strided_slice %6 {offsets = [5, 0], sizes = [1, 128], strides = [1, 1]} : vector<7x128xf32> to vector<1x128xf32>
    %13 = vector.extract_strided_slice %6 {offsets = [6, 0], sizes = [1, 128], strides = [1, 1]} : vector<7x128xf32> to vector<1x128xf32>
    %c0_10 = arith.constant 0 : index
    %c0_11 = arith.constant 0 : index
    %14 = vector.load %arg6[%c0_10, %c0_11] : memref<3x128xf32, #tpu.memory_space<vmem>>, vector<3x128xf32>
    %15 = vector.extract_strided_slice %14 {offsets = [0, 0], sizes = [1, 128], strides = [1, 1]} : vector<3x128xf32> to vector<1x128xf32>
    %16 = vector.extract_strided_slice %14 {offsets = [1, 0], sizes = [1, 128], strides = [1, 1]} : vector<3x128xf32> to vector<1x128xf32>
    %17 = vector.extract_strided_slice %14 {offsets = [2, 0], sizes = [1, 128], strides = [1, 1]} : vector<3x128xf32> to vector<1x128xf32>
    %c0_12 = arith.constant 0 : index
    %c0_13 = arith.constant 0 : index
    %18 = vector.load %arg7[%c0_12, %c0_13] : memref<4x128xf32, #tpu.memory_space<vmem>>, vector<4x128xf32>
    %cst = arith.constant dense<0.000000e+00> : vector<8x128xf32>
    %19 = tpu.matmul %1, %18, %cst {dimension_numbers = #tpu.dot_dimension_numbers<[1], [0], [0], [1], [0, 0, 1, 1], [], []>} : vector<8x4xf32>, vector<4x128xf32>, vector<8x128xf32> -> vector<8x128xf32>
    %20 = vector.broadcast %7 : vector<1x128xf32> to vector<8x128xf32>
    %21 = arith.addf %19, %20 : vector<8x128xf32>
    %22 = vector.broadcast %8 : vector<1x128xf32> to vector<8x128xf32>
    %23 = arith.mulf %21, %22 : vector<8x128xf32>
    %24 = vector.broadcast %9 : vector<1x128xf32> to vector<8x128xf32>
    %25 = arith.addf %23, %24 : vector<8x128xf32>
    %26 = arith.truncf %25 : vector<8x128xf32> to vector<8x128xbf16>
    %cst_14 = arith.constant dense<0.000000e+00> : vector<8x128xf32>
    %27 = tpu.matmul %3, %26, %cst_14 {dimension_numbers = #tpu.dot_dimension_numbers<[1], [0], [0], [1], [0, 0, 1, 1], [], []>} : vector<8x8xbf16>, vector<8x128xbf16>, vector<8x128xf32> -> vector<8x128xf32>
    %cst_15 = arith.constant 1.000000e+00 : f32
    %28 = vector.broadcast %cst_15 : f32 to vector<8x128xf32>
    %29 = arith.mulf %28, %25 : vector<8x128xf32>
    %30 = arith.addf %29, %27 : vector<8x128xf32>
    %c0_16 = arith.constant 0 : index
    %c0_17 = arith.constant 0 : index
    %31 = vector.load %arg8[%c0_16, %c0_17] : memref<128x128xf32, #tpu.memory_space<vmem>>, vector<128x128xf32>
    %cst_18 = arith.constant dense<0.000000e+00> : vector<8x128xf32>
    %32 = tpu.matmul %30, %31, %cst_18 {dimension_numbers = #tpu.dot_dimension_numbers<[1], [0], [0], [1], [0, 0, 1, 1], [], []>} : vector<8x128xf32>, vector<128x128xf32>, vector<8x128xf32> -> vector<8x128xf32>
    %33 = vector.broadcast %10 : vector<1x128xf32> to vector<8x128xf32>
    %34 = arith.addf %32, %33 : vector<8x128xf32>
    %cst_19 = arith.constant 0.000000e+00 : f32
    %35 = vector.broadcast %cst_19 : f32 to vector<8x128xf32>
    %36 = arith.maximumf %34, %35 : vector<8x128xf32>
    %c0_20 = arith.constant 0 : index
    %c0_21 = arith.constant 0 : index
    %37 = vector.load %arg9[%c0_20, %c0_21] : memref<128x128xf32, #tpu.memory_space<vmem>>, vector<128x128xf32>
    %cst_22 = arith.constant dense<0.000000e+00> : vector<8x128xf32>
    %38 = tpu.matmul %36, %37, %cst_22 {dimension_numbers = #tpu.dot_dimension_numbers<[1], [0], [0], [1], [0, 0, 1, 1], [], []>} : vector<8x128xf32>, vector<128x128xf32>, vector<8x128xf32> -> vector<8x128xf32>
    %39 = vector.broadcast %11 : vector<1x128xf32> to vector<8x128xf32>
    %40 = arith.addf %38, %39 : vector<8x128xf32>
    %c0_23 = arith.constant 0 : index
    %c0_24 = arith.constant 0 : index
    %c0_25 = arith.constant 0 : index
    %41 = vector.load %arg17[%c0_23, %c0_24, %c0_25] : memref<1x8x128xf32, #tpu.memory_space<vmem>>, vector<1x8x128xf32>
    %42 = vector.shape_cast %41 : vector<1x8x128xf32> to vector<8x128xf32>
    %43 = vector.shape_cast %40 : vector<8x128xf32> to vector<1x8x128xf32>
    tpu.vector_store %arg17[%c0_23, %c0_24, %c0_25], %43 {strides = array<i32>} : memref<1x8x128xf32, #tpu.memory_space<vmem>>, vector<1x8x128xf32>,
    %44 = arith.extf %3 : vector<8x8xbf16> to vector<8x8xf32>
    %cst_26 = arith.constant dense<0.000000e+00> : vector<8xf32>
    %45 = vector.multi_reduction <add>, %44, %cst_26 [1] : vector<8x8xf32> to vector<8xf32>
    %46 = vector.shape_cast %45 : vector<8xf32> to vector<8x1xf32>
    %47 = arith.truncf %40 : vector<8x128xf32> to vector<8x128xbf16>
    %cst_27 = arith.constant dense<0.000000e+00> : vector<8x128xf32>
    %48 = tpu.matmul %3, %47, %cst_27 {dimension_numbers = #tpu.dot_dimension_numbers<[1], [0], [0], [1], [0, 0, 1, 1], [], []>} : vector<8x8xbf16>, vector<8x128xbf16>, vector<8x128xf32> -> vector<8x128xf32>
    %cst_28 = arith.constant 1.000000e+00 : f32
    %49 = vector.broadcast %cst_28 : f32 to vector<8x128xf32>
    %50 = arith.mulf %49, %40 : vector<8x128xf32>
    %51 = arith.addf %50, %48 : vector<8x128xf32>
    %cst_29 = arith.constant 1.000000e+00 : f32
    %52 = vector.broadcast %cst_29 : f32 to vector<8x1xf32>
    %53 = arith.addf %52, %46 : vector<8x1xf32>
    %54 = vector.broadcast %53 : vector<8x1xf32> to vector<8x128xf32>
    %55 = vector.broadcast %17 : vector<1x128xf32> to vector<8x128xf32>
    %56 = arith.mulf %54, %55 : vector<8x128xf32>
    %c0_30 = arith.constant 0 : index
    %c0_31 = arith.constant 0 : index
    %57 = vector.load %arg10[%c0_30, %c0_31] : memref<128x128xf32, #tpu.memory_space<vmem>>, vector<128x128xf32>
    %cst_32 = arith.constant dense<0.000000e+00> : vector<8x128xf32>
    %58 = tpu.matmul %51, %57, %cst_32 {dimension_numbers = #tpu.dot_dimension_numbers<[1], [0], [0], [1], [0, 0, 1, 1], [], []>} : vector<8x128xf32>, vector<128x128xf32>, vector<8x128xf32> -> vector<8x128xf32>
    %59 = arith.addf %56, %58 : vector<8x128xf32>
    %60 = vector.broadcast %15 : vector<1x128xf32> to vector<8x128xf32>
    %61 = arith.addf %59, %60 : vector<8x128xf32>
    %cst_33 = arith.constant 0.000000e+00 : f32
    %62 = vector.broadcast %cst_33 : f32 to vector<8x128xf32>
    %63 = arith.maximumf %61, %62 : vector<8x128xf32>
    %c0_34 = arith.constant 0 : index
    %c0_35 = arith.constant 0 : index
    %64 = vector.load %arg11[%c0_34, %c0_35] : memref<128x128xf32, #tpu.memory_space<vmem>>, vector<128x128xf32>
    %cst_36 = arith.constant dense<0.000000e+00> : vector<8x128xf32>
    %65 = tpu.matmul %63, %64, %cst_36 {dimension_numbers = #tpu.dot_dimension_numbers<[1], [0], [0], [1], [0, 0, 1, 1], [], []>} : vector<8x128xf32>, vector<128x128xf32>, vector<8x128xf32> -> vector<8x128xf32>
    %66 = vector.broadcast %16 : vector<1x128xf32> to vector<8x128xf32>
    %67 = arith.addf %65, %66 : vector<8x128xf32>
    %68 = arith.index_cast %arg0 : i32 to index
    %69 = memref.load %arg1[%68] : memref<2xi32, #tpu.memory_space<smem>>
    %70 = tpu.iota {dimensions = array<i32: 0>} : vector<8x1xi32>
    %71 = vector.broadcast %69 : i32 to vector<8x1xi32>
    %72 = arith.cmpi eq, %70, %71 : vector<8x1xi32>
    %cst_37 = arith.constant 0.000000e+00 : f32
    %73 = vector.shape_cast %72 : vector<8x1xi1> to vector<8x1xi1>
    %74 = vector.broadcast %73 : vector<8x1xi1> to vector<8x128xi1>
    %75 = vector.broadcast %cst_37 : f32 to vector<8x128xf32>
    %76 = arith.select %74, %67, %75 : vector<8x128xi1>, vector<8x128xf32>
    %cst_38 = arith.constant dense<0.000000e+00> : vector<128xf32>
    %77 = vector.multi_reduction <add>, %76, %cst_38 [0] : vector<8x128xf32> to vector<128xf32>
    %78 = vector.shape_cast %77 : vector<128xf32> to vector<1x128xf32>
    %c0_39 = arith.constant 0 : index
    %c0_40 = arith.constant 0 : index
    %79 = vector.load %arg12[%c0_39, %c0_40] : memref<128x128xf32, #tpu.memory_space<vmem>>, vector<128x128xf32>
    %cst_41 = arith.constant dense<0.000000e+00> : vector<1x128xf32>
    %80 = tpu.matmul %78, %79, %cst_41 {dimension_numbers = #tpu.dot_dimension_numbers<[1], [0], [0], [1], [0, 0, 1, 1], [], []>} : vector<1x128xf32>, vector<128x128xf32>, vector<1x128xf32> -> vector<1x128xf32>
    %c0_42 = arith.constant 0 : index
    %c0_43 = arith.constant 0 : index
    %81 = vector.load %arg13[%c0_42, %c0_43] : memref<128x128xf32, #tpu.memory_space<vmem>>, vector<128x128xf32>
    %cst_44 = arith.constant dense<0.000000e+00> : vector<8x128xf32>
    %82 = tpu.matmul %67, %81, %cst_44 {dimension_numbers = #tpu.dot_dimension_numbers<[1], [0], [0], [1], [0, 0, 1, 1], [], []>} : vector<8x128xf32>, vector<128x128xf32>, vector<8x128xf32> -> vector<8x128xf32>
    %83 = vector.broadcast %80 : vector<1x128xf32> to vector<8x128xf32>
    %84 = arith.addf %83, %82 : vector<8x128xf32>
    %85 = vector.broadcast %12 : vector<1x128xf32> to vector<8x128xf32>
    %86 = arith.addf %84, %85 : vector<8x128xf32>
    %cst_45 = arith.constant 0.000000e+00 : f32
    %87 = vector.broadcast %cst_45 : f32 to vector<8x128xf32>
    %88 = arith.maximumf %86, %87 : vector<8x128xf32>
    %89 = tpu.transpose %88, [1, 0] : vector<8x128xf32> -> vector<128x8xf32>
    %cst_46 = arith.constant dense<0.000000e+00> : vector<1x8xf32>
    %90 = tpu.matmul %13, %89, %cst_46 {dimension_numbers = #tpu.dot_dimension_numbers<[1], [0], [0], [1], [0, 0, 1, 1], [], []>} : vector<1x128xf32>, vector<128x8xf32>, vector<1x8xf32> -> vector<1x8xf32>
    %91 = arith.addf %90, %5 : vector<1x8xf32>
    %cst_47 = arith.constant dense<0xFF800000> : vector<1xf32>
    %92 = vector.multi_reduction <maximumf>, %91, %cst_47 [1] : vector<1x8xf32> to vector<1xf32>
    %93 = vector.shape_cast %92 : vector<1xf32> to vector<1x1xf32>
    %94 = vector.broadcast %93 : vector<1x1xf32> to vector<1x8xf32>
    %95 = arith.subf %91, %94 : vector<1x8xf32>
    %96 = math.exp %95 : vector<1x8xf32>
    %cst_48 = arith.constant dense<0.000000e+00> : vector<1xf32>
    %97 = vector.multi_reduction <add>, %96, %cst_48 [1] : vector<1x8xf32> to vector<1xf32>
    %98 = vector.shape_cast %97 : vector<1xf32> to vector<1x1xf32>
    %99 = vector.broadcast %98 : vector<1x1xf32> to vector<1x8xf32>
    %100 = arith.divf %96, %99 : vector<1x8xf32>
    %c0_49 = arith.constant 0 : index
    %c0_50 = arith.constant 0 : index
    %c0_51 = arith.constant 0 : index
    %101 = vector.load %arg14[%c0_49, %c0_50, %c0_51] : memref<1x1x8xf32, #tpu.memory_space<vmem>>, vector<1x1x8xf32>
    %102 = vector.shape_cast %101 : vector<1x1x8xf32> to vector<1x8xf32>
    %103 = vector.shape_cast %100 : vector<1x8xf32> to vector<1x1x8xf32>
    tpu.vector_store %arg14[%c0_49, %c0_50, %c0_51], %103 {strides = array<i32>} : memref<1x1x8xf32, #tpu.memory_space<vmem>>, vector<1x1x8xf32>,
    %104 = tpu.iota {dimensions = array<i32: 1>} : vector<1x8xi32>
    %105 = vector.broadcast %93 : vector<1x1xf32> to vector<1x8xf32>
    %106 = arith.cmpf oeq, %91, %105 : vector<1x8xf32>
    %c8_i32 = arith.constant 8 : i32
    %107 = vector.broadcast %c8_i32 : i32 to vector<1x8xi32>
    %108 = arith.select %106, %104, %107 : vector<1x8xi1>, vector<1x8xi32>
    %cst_52 = arith.constant dense<2147483647> : vector<1xi32>
    %109 = vector.multi_reduction <minsi>, %108, %cst_52 [1] : vector<1x8xi32> to vector<1xi32>
    %110 = vector.shape_cast %109 : vector<1xi32> to vector<1x1xi32>
    %c0_53 = arith.constant 0 : index
    %c0_54 = arith.constant 0 : index
    %c0_55 = arith.constant 0 : index
    %111 = vector.load %arg15[%c0_53, %c0_54, %c0_55] : memref<1x1x1xi32, #tpu.memory_space<vmem>>, vector<1x1x1xi32>
    %112 = vector.shape_cast %111 : vector<1x1x1xi32> to vector<1x1xi32>
    %113 = vector.shape_cast %110 : vector<1x1xi32> to vector<1x1x1xi32>
    tpu.vector_store %arg15[%c0_53, %c0_54, %c0_55], %113 {strides = array<i32>} : memref<1x1x1xi32, #tpu.memory_space<vmem>>, vector<1x1x1xi32>,
    %114 = math.log %98 : vector<1x1xf32>
    %cst_56 = arith.constant 0.000000e+00 : f32
    %115 = vector.broadcast %cst_56 : f32 to vector<1x1xf32>
    %116 = arith.subf %115, %114 : vector<1x1xf32>
    %c0_57 = arith.constant 0 : index
    %c0_58 = arith.constant 0 : index
    %c0_59 = arith.constant 0 : index
    %117 = vector.load %arg16[%c0_57, %c0_58, %c0_59] : memref<1x1x1xf32, #tpu.memory_space<vmem>>, vector<1x1x1xf32>
    %118 = vector.shape_cast %117 : vector<1x1x1xf32> to vector<1x1xf32>
    %119 = vector.shape_cast %116 : vector<1x1xf32> to vector<1x1x1xf32>
    tpu.vector_store %arg16[%c0_57, %c0_58, %c0_59], %119 {strides = array<i32>} : memref<1x1x1xf32, #tpu.memory_space<vmem>>, vector<1x1x1xf32>,
    return
  }
  func.func @transform_0(%arg0: i32, %arg1: memref<2xi32, #tpu.memory_space<smem>>) -> (i32, i32, i32) {
    %c0_i32 = arith.constant 0 : i32
    %c0_i32_0 = arith.constant 0 : i32
    %c0_i32_1 = arith.constant 0 : i32
    return %arg0, %c0_i32, %c0_i32_0 : i32, i32, i32
  }
  func.func @transform_1(%arg0: i32, %arg1: memref<2xi32, #tpu.memory_space<smem>>) -> (i32, i32, i32) {
    %c0_i32 = arith.constant 0 : i32
    %c0_i32_0 = arith.constant 0 : i32
    %c0_i32_1 = arith.constant 0 : i32
    return %arg0, %c0_i32, %c0_i32_0 : i32, i32, i32
  }
  func.func @transform_2(%arg0: i32, %arg1: memref<2xi32, #tpu.memory_space<smem>>) -> (i32, i32, i32) {
    %c0_i32 = arith.constant 0 : i32
    %c0_i32_0 = arith.constant 0 : i32
    %c0_i32_1 = arith.constant 0 : i32
    return %arg0, %c0_i32, %c0_i32_0 : i32, i32, i32
  }
  func.func @transform_3(%arg0: i32, %arg1: memref<2xi32, #tpu.memory_space<smem>>) -> (i32, i32) {
    %c0_i32 = arith.constant 0 : i32
    %c0_i32_0 = arith.constant 0 : i32
    %c0_i32_1 = arith.constant 0 : i32
    return %c0_i32, %c0_i32_0 : i32, i32
  }
  func.func @transform_4(%arg0: i32, %arg1: memref<2xi32, #tpu.memory_space<smem>>) -> (i32, i32) {
    %c0_i32 = arith.constant 0 : i32
    %c0_i32_0 = arith.constant 0 : i32
    %c0_i32_1 = arith.constant 0 : i32
    return %c0_i32, %c0_i32_0 : i32, i32
  }
  func.func @transform_5(%arg0: i32, %arg1: memref<2xi32, #tpu.memory_space<smem>>) -> (i32, i32) {
    %c0_i32 = arith.constant 0 : i32
    %c0_i32_0 = arith.constant 0 : i32
    %c0_i32_1 = arith.constant 0 : i32
    return %c0_i32, %c0_i32_0 : i32, i32
  }
  func.func @transform_6(%arg0: i32, %arg1: memref<2xi32, #tpu.memory_space<smem>>) -> (i32, i32) {
    %c0_i32 = arith.constant 0 : i32
    %c0_i32_0 = arith.constant 0 : i32
    %c0_i32_1 = arith.constant 0 : i32
    return %c0_i32, %c0_i32_0 : i32, i32
  }
  func.func @transform_7(%arg0: i32, %arg1: memref<2xi32, #tpu.memory_space<smem>>) -> (i32, i32) {
    %c0_i32 = arith.constant 0 : i32
    %c0_i32_0 = arith.constant 0 : i32
    %c0_i32_1 = arith.constant 0 : i32
    return %c0_i32, %c0_i32_0 : i32, i32
  }
  func.func @transform_8(%arg0: i32, %arg1: memref<2xi32, #tpu.memory_space<smem>>) -> (i32, i32) {
    %c0_i32 = arith.constant 0 : i32
    %c0_i32_0 = arith.constant 0 : i32
    %c0_i32_1 = arith.constant 0 : i32
    return %c0_i32, %c0_i32_0 : i32, i32
  }
  func.func @transform_9(%arg0: i32, %arg1: memref<2xi32, #tpu.memory_space<smem>>) -> (i32, i32) {
    %c0_i32 = arith.constant 0 : i32
    %c0_i32_0 = arith.constant 0 : i32
    %c0_i32_1 = arith.constant 0 : i32
    return %c0_i32, %c0_i32_0 : i32, i32
  }
  func.func @transform_10(%arg0: i32, %arg1: memref<2xi32, #tpu.memory_space<smem>>) -> (i32, i32) {
    %c0_i32 = arith.constant 0 : i32
    %c0_i32_0 = arith.constant 0 : i32
    %c0_i32_1 = arith.constant 0 : i32
    return %c0_i32, %c0_i32_0 : i32, i32
  }
  func.func @transform_11(%arg0: i32, %arg1: memref<2xi32, #tpu.memory_space<smem>>) -> (i32, i32) {
    %c0_i32 = arith.constant 0 : i32
    %c0_i32_0 = arith.constant 0 : i32
    %c0_i32_1 = arith.constant 0 : i32
    return %c0_i32, %c0_i32_0 : i32, i32
  }
  func.func @transform_12(%arg0: i32, %arg1: memref<2xi32, #tpu.memory_space<smem>>) -> (i32, i32, i32) {
    %c0_i32 = arith.constant 0 : i32
    %c0_i32_0 = arith.constant 0 : i32
    %c0_i32_1 = arith.constant 0 : i32
    return %arg0, %c0_i32, %c0_i32_0 : i32, i32, i32
  }
  func.func @transform_13(%arg0: i32, %arg1: memref<2xi32, #tpu.memory_space<smem>>) -> (i32, i32, i32) {
    %c0_i32 = arith.constant 0 : i32
    %c0_i32_0 = arith.constant 0 : i32
    %c0_i32_1 = arith.constant 0 : i32
    return %arg0, %c0_i32, %c0_i32_0 : i32, i32, i32
  }
  func.func @transform_14(%arg0: i32, %arg1: memref<2xi32, #tpu.memory_space<smem>>) -> (i32, i32, i32) {
    %c0_i32 = arith.constant 0 : i32
    %c0_i32_0 = arith.constant 0 : i32
    %c0_i32_1 = arith.constant 0 : i32
    return %arg0, %c0_i32, %c0_i32_0 : i32, i32, i32
  }
  func.func @transform_15(%arg0: i32, %arg1: memref<2xi32, #tpu.memory_space<smem>>) -> (i32, i32, i32) {
    %c0_i32 = arith.constant 0 : i32
    %c0_i32_0 = arith.constant 0 : i32
    %c0_i32_1 = arith.constant 0 : i32
    return %arg0, %c0_i32, %c0_i32_0 : i32, i32, i32
  }
}

</mosaic_0001>

<llo_original>
// kernel: sub.16
$region0: #{sub.16}
  #allocation0 [shape = 's32[1]{0}', space=sflag, size = 0x4, scoped, tag = 'scoped memory for sub.16']
  %s0 = inlined_call_operand.vmem [shape: f32[2,1,8], index: 0, kind: input, shape index: {}]
  %s1 = inlined_call_operand.vmem [shape: f32[2,1,8], index: 1, kind: input, shape index: {}]
  %s2 = inlined_call_operand.vmem [shape: f32[2,1,8], index: 2, kind: output, shape index: {}]
  %v3 = vld [vmem:[%s0] sm:$0x3]
  %v4 = vld [vmem:[%s1] sm:$0x3]
  %5 = xla_tuple %v3, %v4
  %6 = xla_tuple %5
  %v7 = vsub.f32 %v3, %v4
  %8 = xla_tuple %v7
  %9 = vst [vmem:[%s2] sm:$0x3] %v7

// kernel: actor_forward.1
$region0: #{actor_forward.1}
  #allocation0 [shape = 'u32[]', space=smem, size = 0x4, offset = 0x4, fixed_abs, tag = 'smem constant byte address 0x4 - core index']
  #allocation1 [shape = 'u32[144,128]{1,0:T(1,128)}', space=vmem, size = 0x12000, scoped, tag = 'internal scratch']
  #allocation2 [shape = 's32[1]{0}', space=sflag, size = 0x4, scoped, tag = 'scoped memory for actor_forward.1']
  #allocation3 [shape = 'u8[512]{0}', space=smem, size = 0x200, scoped, tag = 'prefetched SMEM operand 0']
  %s0 = inlined_call_operand.vmem [shape: s32[2], index: 0, kind: input, shape index: {}]
  %s1 = inlined_call_operand.vmem [shape: f32[2,8,4], index: 1, kind: input, shape index: {}]
  %s2 = inlined_call_operand.vmem [shape: bf16[2,8,8], index: 2, kind: input, shape index: {}]
  %s3 = inlined_call_operand.vmem [shape: f32[2,1,8], index: 3, kind: input, shape index: {}]
  %s4 = inlined_call_operand.vmem [shape: f32[7,128], index: 4, kind: input, shape index: {}]
  %s5 = inlined_call_operand.vmem [shape: f32[3,128], index: 5, kind: input, shape index: {}]
  %s6 = inlined_call_operand.vmem [shape: f32[4,128], index: 6, kind: input, shape index: {}]
  %s7 = inlined_call_operand.vmem [shape: f32[128,128], index: 7, kind: input, shape index: {}]
  %s8 = inlined_call_operand.vmem [shape: f32[128,128], index: 8, kind: input, shape index: {}]
  %s9 = inlined_call_operand.vmem [shape: f32[128,128], index: 9, kind: input, shape index: {}]
  %s10 = inlined_call_operand.vmem [shape: f32[128,128], index: 10, kind: input, shape index: {}]
  %s11 = inlined_call_operand.vmem [shape: f32[128,128], index: 11, kind: input, shape index: {}]
  %s12 = inlined_call_operand.vmem [shape: f32[128,128], index: 12, kind: input, shape index: {}]
  %s13 = inlined_call_operand.hbm [shape: f32[2,1,8], index: 13, kind: output, shape index: {0}]
  %s14 = inlined_call_operand.vmem [shape: s32[2,1,1], index: 14, kind: output, shape index: {1}]
  %s15 = inlined_call_operand.vmem [shape: f32[2,1,1], index: 15, kind: output, shape index: {2}]
  %s16 = inlined_call_operand.vmem [shape: f32[2,8,128], index: 16, kind: output, shape index: {3}]
  %17 = xla_tuple %s13, %s14, %s15, %s16
  %s18 = sld [smem:[#allocation0]]
  $region105: #{actor_forward.1} parent=0
    _
  %s20 = ssub.s32 1, %s18
  %s21 = scalar_select 0, %s20, %s18
  %s22 = sshll.u32 %s0, 4
  %s23 = int_to_ptr.vmem [resolvable:$true] %s22
  %25 = dma.vmem_to_smem %s23, 16, [#allocation3], [#allocation2]
  %26 = dma.done [#allocation2], 16
  %27 = sfence
  $region1: #{actor_forward.1} parent=0
    #allocation4 [shape = 'u8[1024]{0}', space=vmem, size = 0x400, scoped, tag = 'output window, operand 0']
    #allocation5 [shape = 's32[2]{0}', space=sflag, size = 0x8, scoped, tag = 'scoped memory for actor_forward.1']
    %28 = vsyncpa [#allocation5], 0
    %s29 = scalar_lea.sflag [#allocation5], 1
    %30 = vsyncpa %s29, 0
    loop: start=0, step=1, limit=4
    $region2: #{actor_forward.1} parent=1 // loop_pre_header
      _
    $region3: #{actor_forward.1} parent=1 // loop_header
      %s32 = sphi 0, %s36
      %p33 = scmp.ge.s32.totalorder %s32, 4
      %s42 = sphi 0, %s44
      %s45 = sphi 0, %s42
      %s46 = sphi 0, %s45
      %s62 = sphi 0, %s46
      %s68 = sphi 0, %s70
      %s71 = sphi 0, %s68
      %s72 = sphi 0, %s71
      %s88 = sphi 0, %s72
      %s94 = sphi 0, %s96
      %s97 = sphi 0, %s94
      %s98 = sphi 0, %s97
      %s114 = sphi 0, %s98
      %s118 = sphi 0, %s118
      %s120 = sphi 0, %s118
      %s121 = sphi 0, %s120
      %s135 = sphi 0, %s121
      %s139 = sphi 0, %s139
      %s141 = sphi 0, %s139
      %s142 = sphi 0, %s141
      %s156 = sphi 0, %s142
      %s160 = sphi 0, %s160
      %s162 = sphi 0, %s160
      %s163 = sphi 0, %s162
      %s177 = sphi 0, %s163
      %s181 = sphi 0, %s181
      %s183 = sphi 0, %s181
      %s184 = sphi 0, %s183
      %s198 = sphi 0, %s184
      %s202 = sphi 0, %s202
      %s204 = sphi 0, %s202
      %s205 = sphi 0, %s204
      %s219 = sphi 0, %s205
      %s223 = sphi 0, %s223
      %s225 = sphi 0, %s223
      %s226 = sphi 0, %s225
      %s240 = sphi 0, %s226
      %s244 = sphi 0, %s244
      %s246 = sphi 0, %s244
      %s247 = sphi 0, %s246
      %s261 = sphi 0, %s247
      %s265 = sphi 0, %s265
      %s267 = sphi 0, %s265
      %s268 = sphi 0, %s267
      %s282 = sphi 0, %s268
      %s286 = sphi 0, %s286
      %s288 = sphi 0, %s286
      %s289 = sphi 0, %s288
      %s303 = sphi 0, %s289
      %s309 = sphi 0, %s311
      %s312 = sphi 0, %s309
      %s313 = sphi 0, %s312
      %s329 = sphi 0, %s313
      %s335 = sphi 0, %s337
      %s338 = sphi 0, %s335
      %s339 = sphi 0, %s338
      %s355 = sphi 0, %s339
      %s361 = sphi 0, %s363
      %s364 = sphi 0, %s361
      %s365 = sphi 0, %s364
      %s381 = sphi 0, %s365
      %s387 = sphi 0, %s389
      %s390 = sphi 0, %s387
      %s391 = sphi 0, %s390
      %s407 = sphi 0, %s391
    $region4: #{actor_forward.1} parent=1 // loop_header_branch
      %35 = sbr.rel (%p33) target = $region8
    $region5: #{actor_forward.1} parent=1 // loop_body
      %s37 = ssub.s32 %s32, 1
      %s38 = ssub.s32 %s32, 2
      %s39 = sadd.s32 %s32, 1
      %s40 = ssub.s32 %s32, %s39
      %p41 = scmp.eq.s32.totalorder %s40, 0
      %s43 = sadd.s32 %s42, 1
      %s44 = scalar_select %p41, %s42, %s43
      %p47 = pneg %p41
      %p48 = scmp.eq.s32.totalorder %s32, 1
      %p49 = por %p47, %p48
      %p50 = scmp.ne.s32.totalorder %s42, %s45
      %p51 = scmp.eq.s32.totalorder %s32, 0
      %p52 = por %p50, %p51
      %p53 = scmp.ne.s32.totalorder %s42, %s45
      %p54 = scmp.eq.s32.totalorder %s37, 1
      %p55 = por %p53, %p54
      %p56 = scmp.ne.s32.totalorder %s45, %s46
      %p57 = scmp.eq.s32.totalorder %s37, 0
      %p58 = por %p56, %p57
      %p59 = scmp.ne.s32.totalorder %s45, %s46
      %p60 = scmp.eq.s32.totalorder %s38, 1
      %p61 = por %p59, %p60
      %p63 = scmp.ne.s32.totalorder %s46, %s62
      %p64 = scmp.eq.s32.totalorder %s38, 0
      %p65 = por %p63, %p64
      %s66 = ssub.s32 %s32, %s39
      %p67 = scmp.eq.s32.totalorder %s66, 0
      %s69 = sadd.s32 %s68, 1
      %s70 = scalar_select %p67, %s68, %s69
      %p73 = pneg %p67
      %p74 = scmp.eq.s32.totalorder %s32, 1
      %p75 = por %p73, %p74
      %p76 = scmp.ne.s32.totalorder %s68, %s71
      %p77 = scmp.eq.s32.totalorder %s32, 0
      %p78 = por %p76, %p77
      %p79 = scmp.ne.s32.totalorder %s68, %s71
      %p80 = scmp.eq.s32.totalorder %s37, 1
      %p81 = por %p79, %p80
      %p82 = scmp.ne.s32.totalorder %s71, %s72
      %p83 = scmp.eq.s32.totalorder %s37, 0
      %p84 = por %p82, %p83
      %p85 = scmp.ne.s32.totalorder %s71, %s72
      %p86 = scmp.eq.s32.totalorder %s38, 1
      %p87 = por %p85, %p86
      %p89 = scmp.ne.s32.totalorder %s72, %s88
      %p90 = scmp.eq.s32.totalorder %s38, 0
      %p91 = por %p89, %p90
      %s92 = ssub.s32 %s32, %s39
      %p93 = scmp.eq.s32.totalorder %s92, 0
      %s95 = sadd.s32 %s94, 1
      %s96 = scalar_select %p93, %s94, %s95
      %p99 = pneg %p93
      %p100 = scmp.eq.s32.totalorder %s32, 1
      %p101 = por %p99, %p100
      %p102 = scmp.ne.s32.totalorder %s94, %s97
      %p103 = scmp.eq.s32.totalorder %s32, 0
      %p104 = por %p102, %p103
      %p105 = scmp.ne.s32.totalorder %s94, %s97
      %p106 = scmp.eq.s32.totalorder %s37, 1
      %p107 = por %p105, %p106
      %p108 = scmp.ne.s32.totalorder %s97, %s98
      %p109 = scmp.eq.s32.totalorder %s37, 0
      %p110 = por %p108, %p109
      %p111 = scmp.ne.s32.totalorder %s97, %s98
      %p112 = scmp.eq.s32.totalorder %s38, 1
      %p113 = por %p111, %p112
      %p115 = scmp.ne.s32.totalorder %s98, %s114
      %p116 = scmp.eq.s32.totalorder %s38, 0
      %p117 = por %p115, %p116
      %s119 = sadd.s32 %s118, 1
      %p122 = scmp.eq.s32.totalorder %s32, 1
      %p123 = scmp.ne.s32.totalorder %s118, %s120
      %p124 = scmp.eq.s32.totalorder %s32, 0
      %p125 = por %p123, %p124
      %p126 = scmp.ne.s32.totalorder %s118, %s120
      %p127 = scmp.eq.s32.totalorder %s37, 1
      %p128 = por %p126, %p127
      %p129 = scmp.ne.s32.totalorder %s120, %s121
      %p130 = scmp.eq.s32.totalorder %s37, 0
      %p131 = por %p129, %p130
      %p132 = scmp.ne.s32.totalorder %s120, %s121
      %p133 = scmp.eq.s32.totalorder %s38, 1
      %p134 = por %p132, %p133
      %p136 = scmp.ne.s32.totalorder %s121, %s135
      %p137 = scmp.eq.s32.totalorder %s38, 0
      %p138 = por %p136, %p137
      %s140 = sadd.s32 %s139, 1
      %p143 = scmp.eq.s32.totalorder %s32, 1
      %p144 = scmp.ne.s32.totalorder %s139, %s141
      %p145 = scmp.eq.s32.totalorder %s32, 0
      %p146 = por %p144, %p145
      %p147 = scmp.ne.s32.totalorder %s139, %s141
      %p148 = scmp.eq.s32.totalorder %s37, 1
      %p149 = por %p147, %p148
      %p150 = scmp.ne.s32.totalorder %s141, %s142
      %p151 = scmp.eq.s32.totalorder %s37, 0
      %p152 = por %p150, %p151
      %p153 = scmp.ne.s32.totalorder %s141, %s142
      %p154 = scmp.eq.s32.totalorder %s38, 1
      %p155 = por %p153, %p154
      %p157 = scmp.ne.s32.totalorder %s142, %s156
      %p158 = scmp.eq.s32.totalorder %s38, 0
      %p159 = por %p157, %p158
      %s161 = sadd.s32 %s160, 1
      %p164 = scmp.eq.s32.totalorder %s32, 1
      %p165 = scmp.ne.s32.totalorder %s160, %s162
      %p166 = scmp.eq.s32.totalorder %s32, 0
      %p167 = por %p165, %p166
      %p168 = scmp.ne.s32.totalorder %s160, %s162
      %p169 = scmp.eq.s32.totalorder %s37, 1
      %p170 = por %p168, %p169
      %p171 = scmp.ne.s32.totalorder %s162, %s163
      %p172 = scmp.eq.s32.totalorder %s37, 0
      %p173 = por %p171, %p172
      %p174 = scmp.ne.s32.totalorder %s162, %s163
      %p175 = scmp.eq.s32.totalorder %s38, 1
      %p176 = por %p174, %p175
      %p178 = scmp.ne.s32.totalorder %s163, %s177
      %p179 = scmp.eq.s32.totalorder %s38, 0
      %p180 = por %p178, %p179
      %s182 = sadd.s32 %s181, 1
      %p185 = scmp.eq.s32.totalorder %s32, 1
      %p186 = scmp.ne.s32.totalorder %s181, %s183
      %p187 = scmp.eq.s32.totalorder %s32, 0
      %p188 = por %p186, %p187
      %p189 = scmp.ne.s32.totalorder %s181, %s183
      %p190 = scmp.eq.s32.totalorder %s37, 1
      %p191 = por %p189, %p190
      %p192 = scmp.ne.s32.totalorder %s183, %s184
      %p193 = scmp.eq.s32.totalorder %s37, 0
      %p194 = por %p192, %p193
      %p195 = scmp.ne.s32.totalorder %s183, %s184
      %p196 = scmp.eq.s32.totalorder %s38, 1
      %p197 = por %p195, %p196
      %p199 = scmp.ne.s32.totalorder %s184, %s198
      %p200 = scmp.eq.s32.totalorder %s38, 0
      %p201 = por %p199, %p200
      %s203 = sadd.s32 %s202, 1
      %p206 = scmp.eq.s32.totalorder %s32, 1
      %p207 = scmp.ne.s32.totalorder %s202, %s204
      %p208 = scmp.eq.s32.totalorder %s32, 0
      %p209 = por %p207, %p208
      %p210 = scmp.ne.s32.totalorder %s202, %s204
      %p211 = scmp.eq.s32.totalorder %s37, 1
      %p212 = por %p210, %p211
      %p213 = scmp.ne.s32.totalorder %s204, %s205
      %p214 = scmp.eq.s32.totalorder %s37, 0
      %p215 = por %p213, %p214
      %p216 = scmp.ne.s32.totalorder %s204, %s205
      %p217 = scmp.eq.s32.totalorder %s38, 1
      %p218 = por %p216, %p217
      %p220 = scmp.ne.s32.totalorder %s205, %s219
      %p221 = scmp.eq.s32.totalorder %s38, 0
      %p222 = por %p220, %p221
      %s224 = sadd.s32 %s223, 1
      %p227 = scmp.eq.s32.totalorder %s32, 1
      %p228 = scmp.ne.s32.totalorder %s223, %s225
      %p229 = scmp.eq.s32.totalorder %s32, 0
      %p230 = por %p228, %p229
      %p231 = scmp.ne.s32.totalorder %s223, %s225
      %p232 = scmp.eq.s32.totalorder %s37, 1
      %p233 = por %p231, %p232
      %p234 = scmp.ne.s32.totalorder %s225, %s226
      %p235 = scmp.eq.s32.totalorder %s37, 0
      %p236 = por %p234, %p235
      %p237 = scmp.ne.s32.totalorder %s225, %s226
      %p238 = scmp.eq.s32.totalorder %s38, 1
      %p239 = por %p237, %p238
      %p241 = scmp.ne.s32.totalorder %s226, %s240
      %p242 = scmp.eq.s32.totalorder %s38, 0
      %p243 = por %p241, %p242
      %s245 = sadd.s32 %s244, 1
      %p248 = scmp.eq.s32.totalorder %s32, 1
      %p249 = scmp.ne.s32.totalorder %s244, %s246
      %p250 = scmp.eq.s32.totalorder %s32, 0
      %p251 = por %p249, %p250
      %p252 = scmp.ne.s32.totalorder %s244, %s246
      %p253 = scmp.eq.s32.totalorder %s37, 1
      %p254 = por %p252, %p253
      %p255 = scmp.ne.s32.totalorder %s246, %s247
      %p256 = scmp.eq.s32.totalorder %s37, 0
      %p257 = por %p255, %p256
      %p258 = scmp.ne.s32.totalorder %s246, %s247
      %p259 = scmp.eq.s32.totalorder %s38, 1
      %p260 = por %p258, %p259
      %p262 = scmp.ne.s32.totalorder %s247, %s261
      %p263 = scmp.eq.s32.totalorder %s38, 0
      %p264 = por %p262, %p263
      %s266 = sadd.s32 %s265, 1
      %p269 = scmp.eq.s32.totalorder %s32, 1
      %p270 = scmp.ne.s32.totalorder %s265, %s267
      %p271 = scmp.eq.s32.totalorder %s32, 0
      %p272 = por %p270, %p271
      %p273 = scmp.ne.s32.totalorder %s265, %s267
      %p274 = scmp.eq.s32.totalorder %s37, 1
      %p275 = por %p273, %p274
      %p276 = scmp.ne.s32.totalorder %s267, %s268
      %p277 = scmp.eq.s32.totalorder %s37, 0
      %p278 = por %p276, %p277
      %p279 = scmp.ne.s32.totalorder %s267, %s268
      %p280 = scmp.eq.s32.totalorder %s38, 1
      %p281 = por %p279, %p280
      %p283 = scmp.ne.s32.totalorder %s268, %s282
      %p284 = scmp.eq.s32.totalorder %s38, 0
      %p285 = por %p283, %p284
      %s287 = sadd.s32 %s286, 1
      %p290 = scmp.eq.s32.totalorder %s32, 1
      %p291 = scmp.ne.s32.totalorder %s286, %s288
      %p292 = scmp.eq.s32.totalorder %s32, 0
      %p293 = por %p291, %p292
      %p294 = scmp.ne.s32.totalorder %s286, %s288
      %p295 = scmp.eq.s32.totalorder %s37, 1
      %p296 = por %p294, %p295
      %p297 = scmp.ne.s32.totalorder %s288, %s289
      %p298 = scmp.eq.s32.totalorder %s37, 0
      %p299 = por %p297, %p298
      %p300 = scmp.ne.s32.totalorder %s288, %s289
      %p301 = scmp.eq.s32.totalorder %s38, 1
      %p302 = por %p300, %p301
      %p304 = scmp.ne.s32.totalorder %s289, %s303
      %p305 = scmp.eq.s32.totalorder %s38, 0
      %p306 = por %p304, %p305
      %s307 = ssub.s32 %s32, %s39
      %p308 = scmp.eq.s32.totalorder %s307, 0
      %s310 = sadd.s32 %s309, 1
      %s311 = scalar_select %p308, %s309, %s310
      %p314 = pneg %p308
      %p315 = scmp.eq.s32.totalorder %s32, 1
      %p316 = por %p314, %p315
      %p317 = scmp.ne.s32.totalorder %s309, %s312
      %p318 = scmp.eq.s32.totalorder %s32, 0
      %p319 = por %p317, %p318
      %p320 = scmp.ne.s32.totalorder %s309, %s312
      %p321 = scmp.eq.s32.totalorder %s37, 1
      %p322 = por %p320, %p321
      %p323 = scmp.ne.s32.totalorder %s312, %s313
      %p324 = scmp.eq.s32.totalorder %s37, 0
      %p325 = por %p323, %p324
      %p326 = scmp.ne.s32.totalorder %s312, %s313
      %p327 = scmp.eq.s32.totalorder %s38, 1
      %p328 = por %p326, %p327
      %p330 = scmp.ne.s32.totalorder %s313, %s329
      %p331 = scmp.eq.s32.totalorder %s38, 0
      %p332 = por %p330, %p331
      %s333 = ssub.s32 %s32, %s39
      %p334 = scmp.eq.s32.totalorder %s333, 0
      %s336 = sadd.s32 %s335, 1
      %s337 = scalar_select %p334, %s335, %s336
      %p340 = pneg %p334
      %p341 = scmp.eq.s32.totalorder %s32, 1
      %p342 = por %p340, %p341
      %p343 = scmp.ne.s32.totalorder %s335, %s338
      %p344 = scmp.eq.s32.totalorder %s32, 0
      %p345 = por %p343, %p344
      %p346 = scmp.ne.s32.totalorder %s335, %s338
      %p347 = scmp.eq.s32.totalorder %s37, 1
      %p348 = por %p346, %p347
      %p349 = scmp.ne.s32.totalorder %s338, %s339
      %p350 = scmp.eq.s32.totalorder %s37, 0
      %p351 = por %p349, %p350
      %p352 = scmp.ne.s32.totalorder %s338, %s339
      %p353 = scmp.eq.s32.totalorder %s38, 1
      %p354 = por %p352, %p353
      %p356 = scmp.ne.s32.totalorder %s339, %s355
      %p357 = scmp.eq.s32.totalorder %s38, 0
      %p358 = por %p356, %p357
      %s359 = ssub.s32 %s32, %s39
      %p360 = scmp.eq.s32.totalorder %s359, 0
      %s362 = sadd.s32 %s361, 1
      %s363 = scalar_select %p360, %s361, %s362
      %p366 = pneg %p360
      %p367 = scmp.eq.s32.totalorder %s32, 1
      %p368 = por %p366, %p367
      %p369 = scmp.ne.s32.totalorder %s361, %s364
      %p370 = scmp.eq.s32.totalorder %s32, 0
      %p371 = por %p369, %p370
      %p372 = scmp.ne.s32.totalorder %s361, %s364
      %p373 = scmp.eq.s32.totalorder %s37, 1
      %p374 = por %p372, %p373
      %p375 = scmp.ne.s32.totalorder %s364, %s365
      %p376 = scmp.eq.s32.totalorder %s37, 0
      %p377 = por %p375, %p376
      %p378 = scmp.ne.s32.totalorder %s364, %s365
      %p379 = scmp.eq.s32.totalorder %s38, 1
      %p380 = por %p378, %p379
      %p382 = scmp.ne.s32.totalorder %s365, %s381
      %p383 = scmp.eq.s32.totalorder %s38, 0
      %p384 = por %p382, %p383
      %s385 = ssub.s32 %s32, %s39
      %p386 = scmp.eq.s32.totalorder %s385, 0
      %s388 = sadd.s32 %s387, 1
      %s389 = scalar_select %p386, %s387, %s388
      %p392 = pneg %p386
      %p393 = scmp.eq.s32.totalorder %s32, 1
      %p394 = por %p392, %p393
      %p395 = scmp.ne.s32.totalorder %s387, %s390
      %p396 = scmp.eq.s32.totalorder %s32, 0
      %p397 = por %p395, %p396
      %p398 = scmp.ne.s32.totalorder %s387, %s390
      %p399 = scmp.eq.s32.totalorder %s37, 1
      %p400 = por %p398, %p399
      %p401 = scmp.ne.s32.totalorder %s390, %s391
      %p402 = scmp.eq.s32.totalorder %s37, 0
      %p403 = por %p401, %p402
      %p404 = scmp.ne.s32.totalorder %s390, %s391
      %p405 = scmp.eq.s32.totalorder %s38, 1
      %p406 = por %p404, %p405
      %p408 = scmp.ne.s32.totalorder %s391, %s407
      %p409 = scmp.eq.s32.totalorder %s38, 0
      %p410 = por %p408, %p409
      %p411 = scmp.le.s32.totalorder 1, %s32
      %p412 = scmp.lt.s32.totalorder %s32, 3
      %p413 = pnand %p411, %p412
      %p414 = pneg %p413
      // Predicated region
      $region9: #{actor_forward.1} parent=5 // pred_check
        _
      $region10: #{actor_forward.1} parent=5 // pred_check_branch
        %416 = sbr.rel (%p413) target = $region12
      $region11: #{actor_forward.1} parent=5 // pred_region
        %s417 = ssub.s32 %s32, 1
        // Predicated region
        $region13: #{actor_forward.1} parent=11 // pred_check
          %p418 = pneg %p131
        $region14: #{actor_forward.1} parent=11 // pred_check_branch
          %420 = sbr.rel (%p418) target = $region16
        $region15: #{actor_forward.1} parent=11 // pred_region
          _
        $region16: #{actor_forward.1} parent=11 // pred_fallthru
          _
        // Predicated region
        $region17: #{actor_forward.1} parent=11 // pred_check
          %p421 = pneg %p152
        $region18: #{actor_forward.1} parent=11 // pred_check_branch
          %423 = sbr.rel (%p421) target = $region20
        $region19: #{actor_forward.1} parent=11 // pred_region
          _
        $region20: #{actor_forward.1} parent=11 // pred_fallthru
          _
        // Predicated region
        $region21: #{actor_forward.1} parent=11 // pred_check
          %p424 = pneg %p173
        $region22: #{actor_forward.1} parent=11 // pred_check_branch
          %426 = sbr.rel (%p424) target = $region24
        $region23: #{actor_forward.1} parent=11 // pred_region
          _
        $region24: #{actor_forward.1} parent=11 // pred_fallthru
          _
        // Predicated region
        $region25: #{actor_forward.1} parent=11 // pred_check
          %p427 = pneg %p194
        $region26: #{actor_forward.1} parent=11 // pred_check_branch
          %429 = sbr.rel (%p427) target = $region28
        $region27: #{actor_forward.1} parent=11 // pred_region
          _
        $region28: #{actor_forward.1} parent=11 // pred_fallthru
          _
        // Predicated region
        $region29: #{actor_forward.1} parent=11 // pred_check
          %p430 = pneg %p215
        $region30: #{actor_forward.1} parent=11 // pred_check_branch
          %432 = sbr.rel (%p430) target = $region32
        $region31: #{actor_forward.1} parent=11 // pred_region
          _
        $region32: #{actor_forward.1} parent=11 // pred_fallthru
          _
        // Predicated region
        $region33: #{actor_forward.1} parent=11 // pred_check
          %p433 = pneg %p236
        $region34: #{actor_forward.1} parent=11 // pred_check_branch
          %435 = sbr.rel (%p433) target = $region36
        $region35: #{actor_forward.1} parent=11 // pred_region
          _
        $region36: #{actor_forward.1} parent=11 // pred_fallthru
          _
        // Predicated region
        $region37: #{actor_forward.1} parent=11 // pred_check
          %p436 = pneg %p257
        $region38: #{actor_forward.1} parent=11 // pred_check_branch
          %438 = sbr.rel (%p436) target = $region40
        $region39: #{actor_forward.1} parent=11 // pred_region
          _
        $region40: #{actor_forward.1} parent=11 // pred_fallthru
          _
        // Predicated region
        $region41: #{actor_forward.1} parent=11 // pred_check
          %p439 = pneg %p278
        $region42: #{actor_forward.1} parent=11 // pred_check_branch
          %441 = sbr.rel (%p439) target = $region44
        $region43: #{actor_forward.1} parent=11 // pred_region
          _
        $region44: #{actor_forward.1} parent=11 // pred_fallthru
          _
        // Predicated region
        $region45: #{actor_forward.1} parent=11 // pred_check
          %p442 = pneg %p299
        $region46: #{actor_forward.1} parent=11 // pred_check_branch
          %444 = sbr.rel (%p442) target = $region48
        $region47: #{actor_forward.1} parent=11 // pred_region
          _
        $region48: #{actor_forward.1} parent=11 // pred_fallthru
          _
      $region12: #{actor_forward.1} parent=5 // pred_fallthru
        _
      %p445 = scmp.lt.s32.totalorder %s32, 2
      // Predicated region
      $region49: #{actor_forward.1} parent=5 // pred_check
        %p446 = pneg %p445
      $region50: #{actor_forward.1} parent=5 // pred_check_branch
        %448 = sbr.rel (%p446) target = $region52
      $region51: #{actor_forward.1} parent=5 // pred_region
        // Predicated region
        $region53: #{actor_forward.1} parent=51 // pred_check
          %p449 = pneg %p52
        $region54: #{actor_forward.1} parent=51 // pred_check_branch
          %451 = sbr.rel (%p449) target = $region56
        $region55: #{actor_forward.1} parent=51 // pred_region
          %p452 = scmp.lt.s32.totalorder %s32, 1
          %s453 = scalar_select %p452, %s32, 1
          %s454 = smul.addr %s453, 8
          %s455 = scalar_lea.vmem %s1, %s454
        $region56: #{actor_forward.1} parent=51 // pred_fallthru
          _
        // Predicated region
        $region57: #{actor_forward.1} parent=51 // pred_check
          %p456 = pneg %p78
        $region58: #{actor_forward.1} parent=51 // pred_check_branch
          %458 = sbr.rel (%p456) target = $region60
        $region59: #{actor_forward.1} parent=51 // pred_region
          %p459 = scmp.lt.s32.totalorder %s32, 1
          %s460 = scalar_select %p459, %s32, 1
          %s461 = smul.addr %s460, 4
          %s462 = scalar_lea.vmem %s2, %s461
        $region60: #{actor_forward.1} parent=51 // pred_fallthru
          _
        // Predicated region
        $region61: #{actor_forward.1} parent=51 // pred_check
          %p463 = pneg %p104
        $region62: #{actor_forward.1} parent=51 // pred_check_branch
          %465 = sbr.rel (%p463) target = $region64
        $region63: #{actor_forward.1} parent=51 // pred_region
          %p466 = scmp.lt.s32.totalorder %s32, 1
          %s467 = scalar_select %p466, %s32, 1
          %s468 = scalar_lea.vmem %s3, %s467
        $region64: #{actor_forward.1} parent=51 // pred_fallthru
          _
      $region52: #{actor_forward.1} parent=5 // pred_fallthru
        _
      %p469 = scmp.le.s32.totalorder 1, %s32
      %p470 = scmp.lt.s32.totalorder %s32, 3
      %p471 = pnand %p469, %p470
      %p472 = pneg %p471
      // Predicated region
      $region65: #{actor_forward.1} parent=5 // pred_check
        _
      $region66: #{actor_forward.1} parent=5 // pred_check_branch
        %474 = sbr.rel (%p471) target = $region68
      $region67: #{actor_forward.1} parent=5 // pred_region
        %s475 = ssub.s32 %s32, 1
        %p476 = scmp.lt.s32.totalorder %s37, 1
        %s477 = scalar_select %p476, %s37, 1
        %s478 = smul.addr %s477, 8
        %s479 = scalar_lea.vmem %s1, %s478
        %p480 = pneg %p58
        %p481 = pneg %p55
        %p482 = scmp.lt.s32.totalorder %s37, 1
        %s483 = scalar_select %p482, %s37, 1
        %s484 = smul.addr %s483, 4
        %s485 = scalar_lea.vmem %s2, %s484
        %p486 = pneg %p84
        %p487 = pneg %p81
        %p488 = scmp.lt.s32.totalorder %s37, 1
        %s489 = scalar_select %p488, %s37, 1
        %s490 = scalar_lea.vmem %s3, %s489
        %p491 = pneg %p110
        %p492 = pneg %p107
        %p493 = pneg %p131
        %p494 = pneg %p128
        %p495 = pneg %p152
        %p496 = pneg %p149
        %p497 = pneg %p173
        %p498 = pneg %p170
        %p499 = pneg %p194
        %p500 = pneg %p191
        %p501 = pneg %p215
        %p502 = pneg %p212
        %p503 = pneg %p236
        %p504 = pneg %p233
        %p505 = pneg %p257
        %p506 = pneg %p254
        %p507 = pneg %p278
        %p508 = pneg %p275
        %p509 = pneg %p299
        %p510 = pneg %p296
        %p511 = pneg %p325
        %p512 = pneg %p322
        %s513 = sand.u32 %s312, 1
        %s514 = scalar_lea.sflag [#allocation5], %s513
        %s515 = sand.u32 %s312, 1
        %s516 = scalar_lea.vmem [#allocation4], %s515
        %p517 = pneg %p351
        %p518 = pneg %p348
        %p519 = scmp.lt.s32.totalorder %s37, 1
        %s520 = scalar_select %p519, %s37, 1
        %s521 = scalar_lea.vmem %s14, %s520
        %p522 = pneg %p377
        %p523 = pneg %p374
        %p524 = scmp.lt.s32.totalorder %s37, 1
        %s525 = scalar_select %p524, %s37, 1
        %s526 = scalar_lea.vmem %s15, %s525
        %p527 = pneg %p403
        %p528 = pneg %p400
        %p529 = scmp.lt.s32.totalorder %s37, 1
        %s530 = scalar_select %p529, %s37, 1
        %s531 = smul.addr %s530, 8
        %s532 = scalar_lea.vmem %s16, %s531
        %p533 = scmp.lt.s32.totalorder %s37, 1
        %s534 = scalar_select %p533, %s37, 1
        %s535 = smul.addr %s534, 8
        %s536 = scalar_lea.vmem %s1, %s535
        %p537 = scmp.lt.s32.totalorder %s37, 1
        %s538 = scalar_select %p537, %s37, 1
        %s539 = smul.addr %s538, 4
        %s540 = scalar_lea.vmem %s2, %s539
        %p541 = scmp.lt.s32.totalorder %s37, 1
        %s542 = scalar_select %p541, %s37, 1
        %s543 = scalar_lea.vmem %s3, %s542
        %p544 = scmp.lt.s32.totalorder %s37, 1
        %s545 = scalar_select %p544, %s37, 1
        %s546 = scalar_lea.vmem %s14, %s545
        %p547 = scmp.lt.s32.totalorder %s37, 1
        %s548 = scalar_select %p547, %s37, 1
        %s549 = scalar_lea.vmem %s15, %s548
        %p550 = scmp.lt.s32.totalorder %s37, 1
        %s551 = scalar_select %p550, %s37, 1
        %s552 = smul.addr %s551, 8
        %s553 = scalar_lea.vmem %s16, %s552
        %v555 = vld [vmem:[%s536] sm:$0xff]
        %v556 = vld [vmem:[%s540] sm:$0xf]
        %v557 = vld [vmem:[%s543] sm:$0x1]
        %v558 = vld [vmem:[%s4] sm:$0x7f]
        %v559 = vld [vmem:[%s5] sm:$0x7]
        %v560 = vld [vmem:[%s6] sm:$0xf]
        %v561 = vlaneseq
        %v562 = vshrl.u32 %v561, 7
        %v563 = vsub.s32 0, %v562
        %v564 = vrot.slane %v558, %v563
        %vm565 = vcmask 31744
        %v567 = vsel %vm565, %v555, 0
        %vm569 = vcmask 1043456
        %v571 = vsel %vm569, %v560, 0
        %573 = vmatprep.subr.mxu0 0.0
        %574 = vmatpush1.msra.mxu0 %v571
        %575 = vmatprep.subr.mxu0 0.0
        %576 = vmatpush1.msra.mxu0 0.0
        %577 = vmatprep.subr.mxu0 0.0
        %578 = vmatpush1.msra.mxu0 0.0
        %579 = vmatprep.subr.mxu0 0.0
        %580 = vmatpush1.msra.mxu0 0.0
        %581 = vmatprep.subr.mxu0 0.0
        %582 = vmatpush1.msra.mxu0 0.0
        %583 = vmatprep.subr.mxu0 0.0
        %584 = vmatpush1.msra.mxu0 0.0
        %585 = vmatprep.subr.mxu0 0.0
        %586 = vmatpush1.msra.mxu0 0.0
        %587 = vmatprep.subr.mxu0 0.0
        %588 = vmatpush1.msra.mxu0 0.0
        %589 = vmatprep.subr.mxu0 0.0
        %590 = vmatpush1.msra.mxu0 0.0
        %591 = vmatprep.subr.mxu0 0.0
        %592 = vmatpush1.msra.mxu0 0.0
        %593 = vmatprep.subr.mxu0 0.0
        %594 = vmatpush1.msra.mxu0 0.0
        %595 = vmatprep.subr.mxu0 0.0
        %596 = vmatpush1.msra.mxu0 0.0
        %597 = vmatprep.subr.mxu0 0.0
        %598 = vmatpush1.msra.mxu0 0.0
        %599 = vmatprep.subr.mxu0 0.0
        %600 = vmatpush1.msra.mxu0 0.0
        %601 = vmatprep.subr.mxu0 0.0
        %602 = vmatpush1.msra.mxu0 0.0
        %603 = vmatprep.subr.mxu0 0.0
        %604 = vmatpush1.msra.mxu0 0.0
        %605 = vmatprep.subr.mxu0 0.0
        %606 = vmatpush1.msra.mxu0 0.0
        %607 = vmatprep.subr.mxu0 0.0
        %608 = vmatpush1.msra.mxu0 0.0
        %609 = vmatprep.subr.mxu0 0.0
        %610 = vmatpush1.msra.mxu0 0.0
        %611 = vmatprep.subr.mxu0 0.0
        %612 = vmatpush1.msra.mxu0 0.0
        %613 = vmatprep.subr.mxu0 0.0
        %614 = vmatpush1.msra.mxu0 0.0
        %615 = vmatprep.subr.mxu0 0.0
        %616 = vmatpush1.msra.mxu0 0.0
        %617 = vmatprep.subr.mxu0 0.0
        %618 = vmatpush1.msra.mxu0 0.0
        %619 = vmatprep.subr.mxu0 0.0
        %620 = vmatpush1.msra.mxu0 0.0
        %621 = vmatprep.subr.mxu0 0.0
        %622 = vmatpush1.msra.mxu0 0.0
        %623 = vmatprep.subr.mxu0 0.0
        %624 = vmatpush1.msra.mxu0 0.0
        %625 = vmatprep.subr.mxu0 0.0
        %626 = vmatpush1.msra.mxu0 0.0
        %627 = vmatprep.subr.mxu0 0.0
        %628 = vmatpush1.msra.mxu0 0.0
        %629 = vmatprep.subr.mxu0 0.0
        %630 = vmatpush1.msra.mxu0 0.0
        %631 = vmatprep.subr.mxu0 0.0
        %632 = vmatpush1.msra.mxu0 0.0
        %633 = vmatprep.subr.mxu0 0.0
        %634 = vmatpush1.msra.mxu0 0.0
        %635 = vmatprep.subr.mxu0 0.0
        %636 = vmatpush1.msra.mxu0 0.0
        %637 = vmatprep.mubr.f32.mxu0 0.0
        %638 = vmatmul.mubr.f32.gmra.mrb[0].mxu0 %v567
        %v639 = vpop.f32.mrb[0].mxu0
        %v640 = vadd.f32 %v564, %v639
        %v641 = vpop.f32.mrb[0].mxu0
        %642 = vdwg.mxu0
        %v643 = vlaneseq
        %v644 = vshrl.u32 %v643, 7
        %v645 = vsub.s32 1, %v644
        %v646 = vrot.slane %v558, %v645
        %v647 = vmul.f32 %v640, %v646
        %v648 = vlaneseq
        %v649 = vshrl.u32 %v648, 7
        %v650 = vsub.s32 2, %v649
        %v651 = vrot.slane %v558, %v650
        %v652 = vadd.f32 %v647, %v651
        %v653 = vpack.c.bf16 %v652, %v652
        %vm654 = vcmask 64512
        %v656 = vsel %vm654, %v556, 0
        %v659 = vsel %vm569, %v653, 0
        %661 = vmatprep.subr.bf16.mxu0 0
        %662 = vmatpush1.bf16.msra.mxu0 %v659
        %663 = vmatprep.subr.bf16.mxu0 0
        %664 = vmatpush1.bf16.msra.mxu0 0
        %665 = vmatprep.subr.bf16.mxu0 0
        %666 = vmatpush1.bf16.msra.mxu0 0
        %667 = vmatprep.subr.bf16.mxu0 0
        %668 = vmatpush1.bf16.msra.mxu0 0
        %669 = vmatprep.subr.bf16.mxu0 0
        %670 = vmatpush1.bf16.msra.mxu0 0
        %671 = vmatprep.subr.bf16.mxu0 0
        %672 = vmatpush1.bf16.msra.mxu0 0
        %673 = vmatprep.subr.bf16.mxu0 0
        %674 = vmatpush1.bf16.msra.mxu0 0
        %675 = vmatprep.subr.bf16.mxu0 0
        %676 = vmatpush1.bf16.msra.mxu0 0
        %677 = vmatprep.subr.bf16.mxu0 0
        %678 = vmatpush1.bf16.msra.mxu0 0
        %679 = vmatprep.subr.bf16.mxu0 0
        %680 = vmatpush1.bf16.msra.mxu0 0
        %681 = vmatprep.subr.bf16.mxu0 0
        %682 = vmatpush1.bf16.msra.mxu0 0
        %683 = vmatprep.subr.bf16.mxu0 0
        %684 = vmatpush1.bf16.msra.mxu0 0
        %685 = vmatprep.subr.bf16.mxu0 0
        %686 = vmatpush1.bf16.msra.mxu0 0
        %687 = vmatprep.subr.bf16.mxu0 0
        %688 = vmatpush1.bf16.msra.mxu0 0
        %689 = vmatprep.subr.bf16.mxu0 0
        %690 = vmatpush1.bf16.msra.mxu0 0
        %691 = vmatprep.subr.bf16.mxu0 0
        %692 = vmatpush1.bf16.msra.mxu0 0
        %693 = vmatprep.mubr.bf16.mxu0 0
        %694 = vmatmul.mubr.bf16.gmra.mrb[0].mxu0 %v656
        %v695 = vpop.f32.mrb[0].mxu0
        %v696 = vadd.f32 0.0, %v695
        %v697 = vpop.f32.mrb[0].mxu0
        %v698 = vpop.f32.mrb[0].mxu0
        %v699 = vpop.f32.mrb[0].mxu0
        %700 = vdwg.mxu0
        %v701 = vadd.f32 %v652, %v696
        %v702 = vld [vmem:[%s7] sm:$0xff]
        %v703 = vld [vmem:[%s7 + $0x8] sm:$0xff]
        %v704 = vld [vmem:[%s7 + $0x10] sm:$0xff]
        %v705 = vld [vmem:[%s7 + $0x18] sm:$0xff]
        %v706 = vld [vmem:[%s7 + $0x20] sm:$0xff]
        %v707 = vld [vmem:[%s7 + $0x28] sm:$0xff]
        %v708 = vld [vmem:[%s7 + $0x30] sm:$0xff]
        %v709 = vld [vmem:[%s7 + $0x38] sm:$0xff]
        %v710 = vld [vmem:[%s7 + $0x40] sm:$0xff]
        %v711 = vld [vmem:[%s7 + $0x48] sm:$0xff]
        %v712 = vld [vmem:[%s7 + $0x50] sm:$0xff]
        %v713 = vld [vmem:[%s7 + $0x58] sm:$0xff]
        %v714 = vld [vmem:[%s7 + $0x60] sm:$0xff]
        %v715 = vld [vmem:[%s7 + $0x68] sm:$0xff]
        %v716 = vld [vmem:[%s7 + $0x70] sm:$0xff]
        %v717 = vld [vmem:[%s7 + $0x78] sm:$0xff]
        %v718 = vlaneseq
        %v719 = vshrl.u32 %v718, 7
        %v720 = vsub.s32 3, %v719
        %v721 = vrot.slane %v558, %v720
        %722 = vmatprep.subr.mxu0 0.0
        %723 = vmatpush1.msra.mxu0 %v702
        %724 = vmatprep.subr.mxu0 0.0
        %725 = vmatpush1.msra.mxu0 %v703
        %726 = vmatprep.subr.mxu0 0.0
        %727 = vmatpush1.msra.mxu0 %v704
        %728 = vmatprep.subr.mxu0 0.0
        %729 = vmatpush1.msra.mxu0 %v705
        %730 = vmatprep.subr.mxu0 0.0
        %731 = vmatpush1.msra.mxu0 %v706
        %732 = vmatprep.subr.mxu0 0.0
        %733 = vmatpush1.msra.mxu0 %v707
        %734 = vmatprep.subr.mxu0 0.0
        %735 = vmatpush1.msra.mxu0 %v708
        %736 = vmatprep.subr.mxu0 0.0
        %737 = vmatpush1.msra.mxu0 %v709
        %738 = vmatprep.subr.mxu0 0.0
        %739 = vmatpush1.msra.mxu0 %v710
        %740 = vmatprep.subr.mxu0 0.0
        %741 = vmatpush1.msra.mxu0 %v711
        %742 = vmatprep.subr.mxu0 0.0
        %743 = vmatpush1.msra.mxu0 %v712
        %744 = vmatprep.subr.mxu0 0.0
        %745 = vmatpush1.msra.mxu0 %v713
        %746 = vmatprep.subr.mxu0 0.0
        %747 = vmatpush1.msra.mxu0 %v714
        %748 = vmatprep.subr.mxu0 0.0
        %749 = vmatpush1.msra.mxu0 %v715
        %750 = vmatprep.subr.mxu0 0.0
        %751 = vmatpush1.msra.mxu0 %v716
        %752 = vmatprep.subr.mxu0 0.0
        %753 = vmatpush1.msra.mxu0 %v717
        %754 = vmatprep.subr.mxu0 0.0
        %755 = vmatpush1.msra.mxu0 0.0
        %756 = vmatprep.subr.mxu0 0.0
        %757 = vmatpush1.msra.mxu0 0.0
        %758 = vmatprep.subr.mxu0 0.0
        %759 = vmatpush1.msra.mxu0 0.0
        %760 = vmatprep.subr.mxu0 0.0
        %761 = vmatpush1.msra.mxu0 0.0
        %762 = vmatprep.subr.mxu0 0.0
        %763 = vmatpush1.msra.mxu0 0.0
        %764 = vmatprep.subr.mxu0 0.0
        %765 = vmatpush1.msra.mxu0 0.0
        %766 = vmatprep.subr.mxu0 0.0
        %767 = vmatpush1.msra.mxu0 0.0
        %768 = vmatprep.subr.mxu0 0.0
        %769 = vmatpush1.msra.mxu0 0.0
        %770 = vmatprep.subr.mxu0 0.0
        %771 = vmatpush1.msra.mxu0 0.0
        %772 = vmatprep.subr.mxu0 0.0
        %773 = vmatpush1.msra.mxu0 0.0
        %774 = vmatprep.subr.mxu0 0.0
        %775 = vmatpush1.msra.mxu0 0.0
        %776 = vmatprep.subr.mxu0 0.0
        %777 = vmatpush1.msra.mxu0 0.0
        %778 = vmatprep.subr.mxu0 0.0
        %779 = vmatpush1.msra.mxu0 0.0
        %780 = vmatprep.subr.mxu0 0.0
        %781 = vmatpush1.msra.mxu0 0.0
        %782 = vmatprep.subr.mxu0 0.0
        %783 = vmatpush1.msra.mxu0 0.0
        %784 = vmatprep.subr.mxu0 0.0
        %785 = vmatpush1.msra.mxu0 0.0
        %786 = vmatprep.mubr.f32.mxu0 0.0
        %787 = vmatmul.mubr.f32.gmra.mrb[0].mxu0 %v701
        %v788 = vpop.f32.mrb[0].mxu0
        %v789 = vadd.f32 %v721, %v788
        %v790 = vpop.f32.mrb[0].mxu0
        %791 = vdwg.mxu0
        %v792 = vmax.f32 %v789, 0.0
        %v793 = vld [vmem:[%s8] sm:$0xff]
        %v794 = vld [vmem:[%s8 + $0x8] sm:$0xff]
        %v795 = vld [vmem:[%s8 + $0x10] sm:$0xff]
        %v796 = vld [vmem:[%s8 + $0x18] sm:$0xff]
        %v797 = vld [vmem:[%s8 + $0x20] sm:$0xff]
        %v798 = vld [vmem:[%s8 + $0x28] sm:$0xff]
        %v799 = vld [vmem:[%s8 + $0x30] sm:$0xff]
        %v800 = vld [vmem:[%s8 + $0x38] sm:$0xff]
        %v801 = vld [vmem:[%s8 + $0x40] sm:$0xff]
        %v802 = vld [vmem:[%s8 + $0x48] sm:$0xff]
        %v803 = vld [vmem:[%s8 + $0x50] sm:$0xff]
        %v804 = vld [vmem:[%s8 + $0x58] sm:$0xff]
        %v805 = vld [vmem:[%s8 + $0x60] sm:$0xff]
        %v806 = vld [vmem:[%s8 + $0x68] sm:$0xff]
        %v807 = vld [vmem:[%s8 + $0x70] sm:$0xff]
        %v808 = vld [vmem:[%s8 + $0x78] sm:$0xff]
        %v809 = vlaneseq
        %v810 = vshrl.u32 %v809, 7
        %v811 = vsub.s32 4, %v810
        %v812 = vrot.slane %v558, %v811
        %813 = vmatprep.subr.mxu0 0.0
        %814 = vmatpush1.msra.mxu0 %v793
        %815 = vmatprep.subr.mxu0 0.0
        %816 = vmatpush1.msra.mxu0 %v794
        %817 = vmatprep.subr.mxu0 0.0
        %818 = vmatpush1.msra.mxu0 %v795
        %819 = vmatprep.subr.mxu0 0.0
        %820 = vmatpush1.msra.mxu0 %v796
        %821 = vmatprep.subr.mxu0 0.0
        %822 = vmatpush1.msra.mxu0 %v797
        %823 = vmatprep.subr.mxu0 0.0
        %824 = vmatpush1.msra.mxu0 %v798
        %825 = vmatprep.subr.mxu0 0.0
        %826 = vmatpush1.msra.mxu0 %v799
        %827 = vmatprep.subr.mxu0 0.0
        %828 = vmatpush1.msra.mxu0 %v800
        %829 = vmatprep.subr.mxu0 0.0
        %830 = vmatpush1.msra.mxu0 %v801
        %831 = vmatprep.subr.mxu0 0.0
        %832 = vmatpush1.msra.mxu0 %v802
        %833 = vmatprep.subr.mxu0 0.0
        %834 = vmatpush1.msra.mxu0 %v803
        %835 = vmatprep.subr.mxu0 0.0
        %836 = vmatpush1.msra.mxu0 %v804
        %837 = vmatprep.subr.mxu0 0.0
        %838 = vmatpush1.msra.mxu0 %v805
        %839 = vmatprep.subr.mxu0 0.0
        %840 = vmatpush1.msra.mxu0 %v806
        %841 = vmatprep.subr.mxu0 0.0
        %842 = vmatpush1.msra.mxu0 %v807
        %843 = vmatprep.subr.mxu0 0.0
        %844 = vmatpush1.msra.mxu0 %v808
        %845 = vmatprep.subr.mxu0 0.0
        %846 = vmatpush1.msra.mxu0 0.0
        %847 = vmatprep.subr.mxu0 0.0
        %848 = vmatpush1.msra.mxu0 0.0
        %849 = vmatprep.subr.mxu0 0.0
        %850 = vmatpush1.msra.mxu0 0.0
        %851 = vmatprep.subr.mxu0 0.0
        %852 = vmatpush1.msra.mxu0 0.0
        %853 = vmatprep.subr.mxu0 0.0
        %854 = vmatpush1.msra.mxu0 0.0
        %855 = vmatprep.subr.mxu0 0.0
        %856 = vmatpush1.msra.mxu0 0.0
        %857 = vmatprep.subr.mxu0 0.0
        %858 = vmatpush1.msra.mxu0 0.0
        %859 = vmatprep.subr.mxu0 0.0
        %860 = vmatpush1.msra.mxu0 0.0
        %861 = vmatprep.subr.mxu0 0.0
        %862 = vmatpush1.msra.mxu0 0.0
        %863 = vmatprep.subr.mxu0 0.0
        %864 = vmatpush1.msra.mxu0 0.0
        %865 = vmatprep.subr.mxu0 0.0
        %866 = vmatpush1.msra.mxu0 0.0
        %867 = vmatprep.subr.mxu0 0.0
        %868 = vmatpush1.msra.mxu0 0.0
        %869 = vmatprep.subr.mxu0 0.0
        %870 = vmatpush1.msra.mxu0 0.0
        %871 = vmatprep.subr.mxu0 0.0
        %872 = vmatpush1.msra.mxu0 0.0
        %873 = vmatprep.subr.mxu0 0.0
        %874 = vmatpush1.msra.mxu0 0.0
        %875 = vmatprep.subr.mxu0 0.0
        %876 = vmatpush1.msra.mxu0 0.0
        %877 = vmatprep.mubr.f32.mxu0 0.0
        %878 = vmatmul.mubr.f32.gmra.mrb[0].mxu0 %v792
        %v879 = vpop.f32.mrb[0].mxu0
        %v880 = vadd.f32 %v812, %v879
        %v881 = vpop.f32.mrb[0].mxu0
        %882 = vdwg.mxu0
        %883 = vst [vmem:[%s553] sm:$0xff] %v880
        %v884 = vunpack.c.l.bf16 %v556
        %v885 = vsel %vm654, %v884, 0.0
        %886 = vadd.xlane.f32.xlu0 %v885
        %v887 = vpop.xlane.xlu0 %886
        %v888 = vpack.c.bf16 %v880, %v880
        %v890 = vsel %vm569, %v888, 0
        %892 = vmatprep.subr.bf16.mxu0 0
        %893 = vmatpush1.bf16.msra.mxu0 %v890
        %894 = vmatprep.subr.bf16.mxu0 0
        %895 = vmatpush1.bf16.msra.mxu0 0
        %896 = vmatprep.subr.bf16.mxu0 0
        %897 = vmatpush1.bf16.msra.mxu0 0
        %898 = vmatprep.subr.bf16.mxu0 0
        %899 = vmatpush1.bf16.msra.mxu0 0
        %900 = vmatprep.subr.bf16.mxu0 0
        %901 = vmatpush1.bf16.msra.mxu0 0
        %902 = vmatprep.subr.bf16.mxu0 0
        %903 = vmatpush1.bf16.msra.mxu0 0
        %904 = vmatprep.subr.bf16.mxu0 0
        %905 = vmatpush1.bf16.msra.mxu0 0
        %906 = vmatprep.subr.bf16.mxu0 0
        %907 = vmatpush1.bf16.msra.mxu0 0
        %908 = vmatprep.subr.bf16.mxu0 0
        %909 = vmatpush1.bf16.msra.mxu0 0
        %910 = vmatprep.subr.bf16.mxu0 0
        %911 = vmatpush1.bf16.msra.mxu0 0
        %912 = vmatprep.subr.bf16.mxu0 0
        %913 = vmatpush1.bf16.msra.mxu0 0
        %914 = vmatprep.subr.bf16.mxu0 0
        %915 = vmatpush1.bf16.msra.mxu0 0
        %916 = vmatprep.subr.bf16.mxu0 0
        %917 = vmatpush1.bf16.msra.mxu0 0
        %918 = vmatprep.subr.bf16.mxu0 0
        %919 = vmatpush1.bf16.msra.mxu0 0
        %920 = vmatprep.subr.bf16.mxu0 0
        %921 = vmatpush1.bf16.msra.mxu0 0
        %922 = vmatprep.subr.bf16.mxu0 0
        %923 = vmatpush1.bf16.msra.mxu0 0
        %924 = vmatprep.mubr.bf16.mxu0 0
        %925 = vmatmul.mubr.bf16.gmra.mrb[0].mxu0 %v656
        %v926 = vpop.f32.mrb[0].mxu0
        %v927 = vadd.f32 0.0, %v926
        %v928 = vpop.f32.mrb[0].mxu0
        %v929 = vpop.f32.mrb[0].mxu0
        %v930 = vpop.f32.mrb[0].mxu0
        %931 = vdwg.mxu0
        %v932 = vadd.f32 %v880, %v927
        %v933 = vadd.f32 %v887, 1.0
        %v934 = vlaneseq
        %v935 = vshrl.u32 %v934, 7
        %v936 = vsub.s32 2, %v935
        %v937 = vrot.slane %v559, %v936
        %v938 = vmul.f32 %v933, %v937
        %v939 = vld [vmem:[%s9] sm:$0xff]
        %v940 = vld [vmem:[%s9 + $0x8] sm:$0xff]
        %v941 = vld [vmem:[%s9 + $0x10] sm:$0xff]
        %v942 = vld [vmem:[%s9 + $0x18] sm:$0xff]
        %v943 = vld [vmem:[%s9 + $0x20] sm:$0xff]
        %v944 = vld [vmem:[%s9 + $0x28] sm:$0xff]
        %v945 = vld [vmem:[%s9 + $0x30] sm:$0xff]
        %v946 = vld [vmem:[%s9 + $0x38] sm:$0xff]
        %v947 = vld [vmem:[%s9 + $0x40] sm:$0xff]
        %v948 = vld [vmem:[%s9 + $0x48] sm:$0xff]
        %v949 = vld [vmem:[%s9 + $0x50] sm:$0xff]
        %v950 = vld [vmem:[%s9 + $0x58] sm:$0xff]
        %v951 = vld [vmem:[%s9 + $0x60] sm:$0xff]
        %v952 = vld [vmem:[%s9 + $0x68] sm:$0xff]
        %v953 = vld [vmem:[%s9 + $0x70] sm:$0xff]
        %v954 = vld [vmem:[%s9 + $0x78] sm:$0xff]
        %955 = vmatprep.subr.mxu0 0.0
        %956 = vmatpush1.msra.mxu0 %v939
        %957 = vmatprep.subr.mxu0 0.0
        %958 = vmatpush1.msra.mxu0 %v940
        %959 = vmatprep.subr.mxu0 0.0
        %960 = vmatpush1.msra.mxu0 %v941
        %961 = vmatprep.subr.mxu0 0.0
        %962 = vmatpush1.msra.mxu0 %v942
        %963 = vmatprep.subr.mxu0 0.0
        %964 = vmatpush1.msra.mxu0 %v943
        %965 = vmatprep.subr.mxu0 0.0
        %966 = vmatpush1.msra.mxu0 %v944
        %967 = vmatprep.subr.mxu0 0.0
        %968 = vmatpush1.msra.mxu0 %v945
        %969 = vmatprep.subr.mxu0 0.0
        %970 = vmatpush1.msra.mxu0 %v946
        %971 = vmatprep.subr.mxu0 0.0
        %972 = vmatpush1.msra.mxu0 %v947
        %973 = vmatprep.subr.mxu0 0.0
        %974 = vmatpush1.msra.mxu0 %v948
        %975 = vmatprep.subr.mxu0 0.0
        %976 = vmatpush1.msra.mxu0 %v949
        %977 = vmatprep.subr.mxu0 0.0
        %978 = vmatpush1.msra.mxu0 %v950
        %979 = vmatprep.subr.mxu0 0.0
        %980 = vmatpush1.msra.mxu0 %v951
        %981 = vmatprep.subr.mxu0 0.0
        %982 = vmatpush1.msra.mxu0 %v952
        %983 = vmatprep.subr.mxu0 0.0
        %984 = vmatpush1.msra.mxu0 %v953
        %985 = vmatprep.subr.mxu0 0.0
        %986 = vmatpush1.msra.mxu0 %v954
        %987 = vmatprep.subr.mxu0 0.0
        %988 = vmatpush1.msra.mxu0 0.0
        %989 = vmatprep.subr.mxu0 0.0
        %990 = vmatpush1.msra.mxu0 0.0
        %991 = vmatprep.subr.mxu0 0.0
        %992 = vmatpush1.msra.mxu0 0.0
        %993 = vmatprep.subr.mxu0 0.0
        %994 = vmatpush1.msra.mxu0 0.0
        %995 = vmatprep.subr.mxu0 0.0
        %996 = vmatpush1.msra.mxu0 0.0
        %997 = vmatprep.subr.mxu0 0.0
        %998 = vmatpush1.msra.mxu0 0.0
        %999 = vmatprep.subr.mxu0 0.0
        %1000 = vmatpush1.msra.mxu0 0.0
        %1001 = vmatprep.subr.mxu0 0.0
        %1002 = vmatpush1.msra.mxu0 0.0
        %1003 = vmatprep.subr.mxu0 0.0
        %1004 = vmatpush1.msra.mxu0 0.0
        %1005 = vmatprep.subr.mxu0 0.0
        %1006 = vmatpush1.msra.mxu0 0.0
        %1007 = vmatprep.subr.mxu0 0.0
        %1008 = vmatpush1.msra.mxu0 0.0
        %1009 = vmatprep.subr.mxu0 0.0
        %1010 = vmatpush1.msra.mxu0 0.0
        %1011 = vmatprep.subr.mxu0 0.0
        %1012 = vmatpush1.msra.mxu0 0.0
        %1013 = vmatprep.subr.mxu0 0.0
        %1014 = vmatpush1.msra.mxu0 0.0
        %1015 = vmatprep.subr.mxu0 0.0
        %1016 = vmatpush1.msra.mxu0 0.0
        %1017 = vmatprep.subr.mxu0 0.0
        %1018 = vmatpush1.msra.mxu0 0.0
        %1019 = vmatprep.mubr.f32.mxu0 0.0
        %1020 = vmatmul.mubr.f32.gmra.mrb[0].mxu0 %v932
        %v1021 = vpop.f32.mrb[0].mxu0
        %v1022 = vadd.f32 0.0, %v1021
        %v1023 = vpop.f32.mrb[0].mxu0
        %1024 = vdwg.mxu0
        %v1025 = vadd.f32 %v938, %v1022
        %v1026 = vlaneseq
        %v1027 = vshrl.u32 %v1026, 7
        %v1028 = vsub.s32 0, %v1027
        %v1029 = vrot.slane %v559, %v1028
        %v1030 = vadd.f32 %v1025, %v1029
        %v1031 = vmax.f32 %v1030, 0.0
        %v1032 = vld [vmem:[%s10] sm:$0xff]
        %v1033 = vld [vmem:[%s10 + $0x8] sm:$0xff]
        %v1034 = vld [vmem:[%s10 + $0x10] sm:$0xff]
        %v1035 = vld [vmem:[%s10 + $0x18] sm:$0xff]
        %v1036 = vld [vmem:[%s10 + $0x20] sm:$0xff]
        %v1037 = vld [vmem:[%s10 + $0x28] sm:$0xff]
        %v1038 = vld [vmem:[%s10 + $0x30] sm:$0xff]
        %v1039 = vld [vmem:[%s10 + $0x38] sm:$0xff]
        %v1040 = vld [vmem:[%s10 + $0x40] sm:$0xff]
        %v1041 = vld [vmem:[%s10 + $0x48] sm:$0xff]
        %v1042 = vld [vmem:[%s10 + $0x50] sm:$0xff]
        %v1043 = vld [vmem:[%s10 + $0x58] sm:$0xff]
        %v1044 = vld [vmem:[%s10 + $0x60] sm:$0xff]
        %v1045 = vld [vmem:[%s10 + $0x68] sm:$0xff]
        %v1046 = vld [vmem:[%s10 + $0x70] sm:$0xff]
        %v1047 = vld [vmem:[%s10 + $0x78] sm:$0xff]
        %v1048 = vlaneseq
        %v1049 = vshrl.u32 %v1048, 7
        %v1050 = vsub.s32 1, %v1049
        %v1051 = vrot.slane %v559, %v1050
        %1052 = vmatprep.subr.mxu0 0.0
        %1053 = vmatpush1.msra.mxu0 %v1032
        %1054 = vmatprep.subr.mxu0 0.0
        %1055 = vmatpush1.msra.mxu0 %v1033
        %1056 = vmatprep.subr.mxu0 0.0
        %1057 = vmatpush1.msra.mxu0 %v1034
        %1058 = vmatprep.subr.mxu0 0.0
        %1059 = vmatpush1.msra.mxu0 %v1035
        %1060 = vmatprep.subr.mxu0 0.0
        %1061 = vmatpush1.msra.mxu0 %v1036
        %1062 = vmatprep.subr.mxu0 0.0
        %1063 = vmatpush1.msra.mxu0 %v1037
        %1064 = vmatprep.subr.mxu0 0.0
        %1065 = vmatpush1.msra.mxu0 %v1038
        %1066 = vmatprep.subr.mxu0 0.0
        %1067 = vmatpush1.msra.mxu0 %v1039
        %1068 = vmatprep.subr.mxu0 0.0
        %1069 = vmatpush1.msra.mxu0 %v1040
        %1070 = vmatprep.subr.mxu0 0.0
        %1071 = vmatpush1.msra.mxu0 %v1041
        %1072 = vmatprep.subr.mxu0 0.0
        %1073 = vmatpush1.msra.mxu0 %v1042
        %1074 = vmatprep.subr.mxu0 0.0
        %1075 = vmatpush1.msra.mxu0 %v1043
        %1076 = vmatprep.subr.mxu0 0.0
        %1077 = vmatpush1.msra.mxu0 %v1044
        %1078 = vmatprep.subr.mxu0 0.0
        %1079 = vmatpush1.msra.mxu0 %v1045
        %1080 = vmatprep.subr.mxu0 0.0
        %1081 = vmatpush1.msra.mxu0 %v1046
        %1082 = vmatprep.subr.mxu0 0.0
        %1083 = vmatpush1.msra.mxu0 %v1047
        %1084 = vmatprep.subr.mxu0 0.0
        %1085 = vmatpush1.msra.mxu0 0.0
        %1086 = vmatprep.subr.mxu0 0.0
        %1087 = vmatpush1.msra.mxu0 0.0
        %1088 = vmatprep.subr.mxu0 0.0
        %1089 = vmatpush1.msra.mxu0 0.0
        %1090 = vmatprep.subr.mxu0 0.0
        %1091 = vmatpush1.msra.mxu0 0.0
        %1092 = vmatprep.subr.mxu0 0.0
        %1093 = vmatpush1.msra.mxu0 0.0
        %1094 = vmatprep.subr.mxu0 0.0
        %1095 = vmatpush1.msra.mxu0 0.0
        %1096 = vmatprep.subr.mxu0 0.0
        %1097 = vmatpush1.msra.mxu0 0.0
        %1098 = vmatprep.subr.mxu0 0.0
        %1099 = vmatpush1.msra.mxu0 0.0
        %1100 = vmatprep.subr.mxu0 0.0
        %1101 = vmatpush1.msra.mxu0 0.0
        %1102 = vmatprep.subr.mxu0 0.0
        %1103 = vmatpush1.msra.mxu0 0.0
        %1104 = vmatprep.subr.mxu0 0.0
        %1105 = vmatpush1.msra.mxu0 0.0
        %1106 = vmatprep.subr.mxu0 0.0
        %1107 = vmatpush1.msra.mxu0 0.0
        %1108 = vmatprep.subr.mxu0 0.0
        %1109 = vmatpush1.msra.mxu0 0.0
        %1110 = vmatprep.subr.mxu0 0.0
        %1111 = vmatpush1.msra.mxu0 0.0
        %1112 = vmatprep.subr.mxu0 0.0
        %1113 = vmatpush1.msra.mxu0 0.0
        %1114 = vmatprep.subr.mxu0 0.0
        %1115 = vmatpush1.msra.mxu0 0.0
        %1116 = vmatprep.mubr.f32.mxu0 0.0
        %1117 = vmatmul.mubr.f32.gmra.mrb[0].mxu0 %v1031
        %v1118 = vpop.f32.mrb[0].mxu0
        %v1119 = vadd.f32 %v1051, %v1118
        %v1120 = vpop.f32.mrb[0].mxu0
        %1121 = vdwg.mxu0
        %s1122 = sld [smem:[#allocation3 + %s37]]
        %v1123 = vlaneseq
        %v1124 = vshrl.u32 %v1123, 7
        %v1125 = vstv %s1122
        %vm1126 = vcmp.eq.s32.totalorder %v1124, %v1125
        %v1127 = vsel %vm1126, 1, 0
        %vm1128 = vcmp.eq.s32.totalorder %v1127, 1
        %v1129 = vsel %vm1128, %v1119, 0.0
        %v1130 = vrot.slane %v1129, 4
        %v1131 = vadd.f32 %v1129, %v1130
        %v1132 = vrot.slane %v1131, 2
        %v1133 = vadd.f32 %v1131, %v1132
        %v1134 = vrot.slane %v1133, 1
        %v1135 = vadd.f32 %v1133, %v1134
        %v1136 = vld [vmem:[%s11] sm:$0xff]
        %v1137 = vld [vmem:[%s11 + $0x8] sm:$0xff]
        %v1138 = vld [vmem:[%s11 + $0x10] sm:$0xff]
        %v1139 = vld [vmem:[%s11 + $0x18] sm:$0xff]
        %v1140 = vld [vmem:[%s11 + $0x20] sm:$0xff]
        %v1141 = vld [vmem:[%s11 + $0x28] sm:$0xff]
        %v1142 = vld [vmem:[%s11 + $0x30] sm:$0xff]
        %v1143 = vld [vmem:[%s11 + $0x38] sm:$0xff]
        %v1144 = vld [vmem:[%s11 + $0x40] sm:$0xff]
        %v1145 = vld [vmem:[%s11 + $0x48] sm:$0xff]
        %v1146 = vld [vmem:[%s11 + $0x50] sm:$0xff]
        %v1147 = vld [vmem:[%s11 + $0x58] sm:$0xff]
        %v1148 = vld [vmem:[%s11 + $0x60] sm:$0xff]
        %v1149 = vld [vmem:[%s11 + $0x68] sm:$0xff]
        %v1150 = vld [vmem:[%s11 + $0x70] sm:$0xff]
        %v1151 = vld [vmem:[%s11 + $0x78] sm:$0xff]
        %1152 = vmatprep.subr.mxu0 0.0
        %1153 = vmatpush1.msra.mxu0 %v1136
        %1154 = vmatprep.subr.mxu0 0.0
        %1155 = vmatpush1.msra.mxu0 %v1137
        %1156 = vmatprep.subr.mxu0 0.0
        %1157 = vmatpush1.msra.mxu0 %v1138
        %1158 = vmatprep.subr.mxu0 0.0
        %1159 = vmatpush1.msra.mxu0 %v1139
        %1160 = vmatprep.subr.mxu0 0.0
        %1161 = vmatpush1.msra.mxu0 %v1140
        %1162 = vmatprep.subr.mxu0 0.0
        %1163 = vmatpush1.msra.mxu0 %v1141
        %1164 = vmatprep.subr.mxu0 0.0
        %1165 = vmatpush1.msra.mxu0 %v1142
        %1166 = vmatprep.subr.mxu0 0.0
        %1167 = vmatpush1.msra.mxu0 %v1143
        %1168 = vmatprep.subr.mxu0 0.0
        %1169 = vmatpush1.msra.mxu0 %v1144
        %1170 = vmatprep.subr.mxu0 0.0
        %1171 = vmatpush1.msra.mxu0 %v1145
        %1172 = vmatprep.subr.mxu0 0.0
        %1173 = vmatpush1.msra.mxu0 %v1146
        %1174 = vmatprep.subr.mxu0 0.0
        %1175 = vmatpush1.msra.mxu0 %v1147
        %1176 = vmatprep.subr.mxu0 0.0
        %1177 = vmatpush1.msra.mxu0 %v1148
        %1178 = vmatprep.subr.mxu0 0.0
        %1179 = vmatpush1.msra.mxu0 %v1149
        %1180 = vmatprep.subr.mxu0 0.0
        %1181 = vmatpush1.msra.mxu0 %v1150
        %1182 = vmatprep.subr.mxu0 0.0
        %1183 = vmatpush1.msra.mxu0 %v1151
        %1184 = vmatprep.subr.mxu0 0.0
        %1185 = vmatpush1.msra.mxu0 0.0
        %1186 = vmatprep.subr.mxu0 0.0
        %1187 = vmatpush1.msra.mxu0 0.0
        %1188 = vmatprep.subr.mxu0 0.0
        %1189 = vmatpush1.msra.mxu0 0.0
        %1190 = vmatprep.subr.mxu0 0.0
        %1191 = vmatpush1.msra.mxu0 0.0
        %1192 = vmatprep.subr.mxu0 0.0
        %1193 = vmatpush1.msra.mxu0 0.0
        %1194 = vmatprep.subr.mxu0 0.0
        %1195 = vmatpush1.msra.mxu0 0.0
        %1196 = vmatprep.subr.mxu0 0.0
        %1197 = vmatpush1.msra.mxu0 0.0
        %1198 = vmatprep.subr.mxu0 0.0
        %1199 = vmatpush1.msra.mxu0 0.0
        %1200 = vmatprep.subr.mxu0 0.0
        %1201 = vmatpush1.msra.mxu0 0.0
        %1202 = vmatprep.subr.mxu0 0.0
        %1203 = vmatpush1.msra.mxu0 0.0
        %1204 = vmatprep.subr.mxu0 0.0
        %1205 = vmatpush1.msra.mxu0 0.0
        %1206 = vmatprep.subr.mxu0 0.0
        %1207 = vmatpush1.msra.mxu0 0.0
        %1208 = vmatprep.subr.mxu0 0.0
        %1209 = vmatpush1.msra.mxu0 0.0
        %1210 = vmatprep.subr.mxu0 0.0
        %1211 = vmatpush1.msra.mxu0 0.0
        %1212 = vmatprep.subr.mxu0 0.0
        %1213 = vmatpush1.msra.mxu0 0.0
        %1214 = vmatprep.subr.mxu0 0.0
        %1215 = vmatpush1.msra.mxu0 0.0
        %1216 = vmatprep.mubr.f32.mxu0 0.0
        %1217 = vmatmul.mubr.f32.gmra.mrb[0].mxu0 %v1135
        %v1218 = vpop.f32.mrb[0].mxu0
        %v1219 = vadd.f32 0.0, %v1218
        %v1220 = vpop.f32.mrb[0].mxu0
        %1221 = vdwg.mxu0
        %v1222 = vld [vmem:[%s12] sm:$0xff]
        %v1223 = vld [vmem:[%s12 + $0x8] sm:$0xff]
        %v1224 = vld [vmem:[%s12 + $0x10] sm:$0xff]
        %v1225 = vld [vmem:[%s12 + $0x18] sm:$0xff]
        %v1226 = vld [vmem:[%s12 + $0x20] sm:$0xff]
        %v1227 = vld [vmem:[%s12 + $0x28] sm:$0xff]
        %v1228 = vld [vmem:[%s12 + $0x30] sm:$0xff]
        %v1229 = vld [vmem:[%s12 + $0x38] sm:$0xff]
        %v1230 = vld [vmem:[%s12 + $0x40] sm:$0xff]
        %v1231 = vld [vmem:[%s12 + $0x48] sm:$0xff]
        %v1232 = vld [vmem:[%s12 + $0x50] sm:$0xff]
        %v1233 = vld [vmem:[%s12 + $0x58] sm:$0xff]
        %v1234 = vld [vmem:[%s12 + $0x60] sm:$0xff]
        %v1235 = vld [vmem:[%s12 + $0x68] sm:$0xff]
        %v1236 = vld [vmem:[%s12 + $0x70] sm:$0xff]
        %v1237 = vld [vmem:[%s12 + $0x78] sm:$0xff]
        %1238 = vmatprep.subr.mxu0 0.0
        %1239 = vmatpush1.msra.mxu0 %v1222
        %1240 = vmatprep.subr.mxu0 0.0
        %1241 = vmatpush1.msra.mxu0 %v1223
        %1242 = vmatprep.subr.mxu0 0.0
        %1243 = vmatpush1.msra.mxu0 %v1224
        %1244 = vmatprep.subr.mxu0 0.0
        %1245 = vmatpush1.msra.mxu0 %v1225
        %1246 = vmatprep.subr.mxu0 0.0
        %1247 = vmatpush1.msra.mxu0 %v1226
        %1248 = vmatprep.subr.mxu0 0.0
        %1249 = vmatpush1.msra.mxu0 %v1227
        %1250 = vmatprep.subr.mxu0 0.0
        %1251 = vmatpush1.msra.mxu0 %v1228
        %1252 = vmatprep.subr.mxu0 0.0
        %1253 = vmatpush1.msra.mxu0 %v1229
        %1254 = vmatprep.subr.mxu0 0.0
        %1255 = vmatpush1.msra.mxu0 %v1230
        %1256 = vmatprep.subr.mxu0 0.0
        %1257 = vmatpush1.msra.mxu0 %v1231
        %1258 = vmatprep.subr.mxu0 0.0
        %1259 = vmatpush1.msra.mxu0 %v1232
        %1260 = vmatprep.subr.mxu0 0.0
        %1261 = vmatpush1.msra.mxu0 %v1233
        %1262 = vmatprep.subr.mxu0 0.0
        %1263 = vmatpush1.msra.mxu0 %v1234
        %1264 = vmatprep.subr.mxu0 0.0
        %1265 = vmatpush1.msra.mxu0 %v1235
        %1266 = vmatprep.subr.mxu0 0.0
        %1267 = vmatpush1.msra.mxu0 %v1236
        %1268 = vmatprep.subr.mxu0 0.0
        %1269 = vmatpush1.msra.mxu0 %v1237
        %1270 = vmatprep.subr.mxu0 0.0
        %1271 = vmatpush1.msra.mxu0 0.0
        %1272 = vmatprep.subr.mxu0 0.0
        %1273 = vmatpush1.msra.mxu0 0.0
        %1274 = vmatprep.subr.mxu0 0.0
        %1275 = vmatpush1.msra.mxu0 0.0
        %1276 = vmatprep.subr.mxu0 0.0
        %1277 = vmatpush1.msra.mxu0 0.0
        %1278 = vmatprep.subr.mxu0 0.0
        %1279 = vmatpush1.msra.mxu0 0.0
        %1280 = vmatprep.subr.mxu0 0.0
        %1281 = vmatpush1.msra.mxu0 0.0
        %1282 = vmatprep.subr.mxu0 0.0
        %1283 = vmatpush1.msra.mxu0 0.0
        %1284 = vmatprep.subr.mxu0 0.0
        %1285 = vmatpush1.msra.mxu0 0.0
        %1286 = vmatprep.subr.mxu0 0.0
        %1287 = vmatpush1.msra.mxu0 0.0
        %1288 = vmatprep.subr.mxu0 0.0
        %1289 = vmatpush1.msra.mxu0 0.0
        %1290 = vmatprep.subr.mxu0 0.0
        %1291 = vmatpush1.msra.mxu0 0.0
        %1292 = vmatprep.subr.mxu0 0.0
        %1293 = vmatpush1.msra.mxu0 0.0
        %1294 = vmatprep.subr.mxu0 0.0
        %1295 = vmatpush1.msra.mxu0 0.0
        %1296 = vmatprep.subr.mxu0 0.0
        %1297 = vmatpush1.msra.mxu0 0.0
        %1298 = vmatprep.subr.mxu0 0.0
        %1299 = vmatpush1.msra.mxu0 0.0
        %1300 = vmatprep.subr.mxu0 0.0
        %1301 = vmatpush1.msra.mxu0 0.0
        %1302 = vmatprep.mubr.f32.mxu0 0.0
        %1303 = vmatmul.mubr.f32.gmra.mrb[0].mxu0 %v1119
        %v1304 = vpop.f32.mrb[0].mxu0
        %v1305 = vadd.f32 0.0, %v1304
        %v1306 = vpop.f32.mrb[0].mxu0
        %1307 = vdwg.mxu0
        %v1308 = vlaneseq
        %v1309 = vshrl.u32 %v1308, 7
        %v1310 = vsub.s32 0, %v1309
        %v1311 = vrot.slane %v1219, %v1310
        %v1312 = vadd.f32 %v1311, %v1305
        %v1313 = vlaneseq
        %v1314 = vshrl.u32 %v1313, 7
        %v1315 = vsub.s32 5, %v1314
        %v1316 = vrot.slane %v558, %v1315
        %v1317 = vadd.f32 %v1312, %v1316
        %v1318 = vmax.f32 %v1317, 0.0
        %v1320 = vrot.slane %v558, 6
        %1322 = vmatprep.subr.mxu0 0.0
        %1323 = vmatpush1.xpose.msra.mxu0 %v1318
        %1324 = vmatprep.subr.mxu0 0.0
        %1325 = vmatpush1.xpose.msra.mxu0 0.0
        %1326 = vmatprep.subr.mxu0 0.0
        %1327 = vmatpush1.xpose.msra.mxu0 0.0
        %1328 = vmatprep.subr.mxu0 0.0
        %1329 = vmatpush1.xpose.msra.mxu0 0.0
        %1330 = vmatprep.subr.mxu0 0.0
        %1331 = vmatpush1.xpose.msra.mxu0 0.0
        %1332 = vmatprep.subr.mxu0 0.0
        %1333 = vmatpush1.xpose.msra.mxu0 0.0
        %1334 = vmatprep.subr.mxu0 0.0
        %1335 = vmatpush1.xpose.msra.mxu0 0.0
        %1336 = vmatprep.subr.mxu0 0.0
        %1337 = vmatpush1.xpose.msra.mxu0 0.0
        %1338 = vmatprep.subr.mxu0 0.0
        %1339 = vmatpush1.xpose.msra.mxu0 0.0
        %1340 = vmatprep.subr.mxu0 0.0
        %1341 = vmatpush1.xpose.msra.mxu0 0.0
        %1342 = vmatprep.subr.mxu0 0.0
        %1343 = vmatpush1.xpose.msra.mxu0 0.0
        %1344 = vmatprep.subr.mxu0 0.0
        %1345 = vmatpush1.xpose.msra.mxu0 0.0
        %1346 = vmatprep.subr.mxu0 0.0
        %1347 = vmatpush1.xpose.msra.mxu0 0.0
        %1348 = vmatprep.subr.mxu0 0.0
        %1349 = vmatpush1.xpose.msra.mxu0 0.0
        %1350 = vmatprep.subr.mxu0 0.0
        %1351 = vmatpush1.xpose.msra.mxu0 0.0
        %1352 = vmatprep.subr.mxu0 0.0
        %1353 = vmatpush1.xpose.msra.mxu0 0.0
        %1354 = vmatprep.subr.mxu0 0.0
        %1355 = vmatpush1.xpose.msra.mxu0 0.0
        %1356 = vmatprep.subr.mxu0 0.0
        %1357 = vmatpush1.xpose.msra.mxu0 0.0
        %1358 = vmatprep.subr.mxu0 0.0
        %1359 = vmatpush1.xpose.msra.mxu0 0.0
        %1360 = vmatprep.subr.mxu0 0.0
        %1361 = vmatpush1.xpose.msra.mxu0 0.0
        %1362 = vmatprep.subr.mxu0 0.0
        %1363 = vmatpush1.xpose.msra.mxu0 0.0
        %1364 = vmatprep.subr.mxu0 0.0
        %1365 = vmatpush1.xpose.msra.mxu0 0.0
        %1366 = vmatprep.subr.mxu0 0.0
        %1367 = vmatpush1.xpose.msra.mxu0 0.0
        %1368 = vmatprep.subr.mxu0 0.0
        %1369 = vmatpush1.xpose.msra.mxu0 0.0
        %1370 = vmatprep.subr.mxu0 0.0
        %1371 = vmatpush1.xpose.msra.mxu0 0.0
        %1372 = vmatprep.subr.mxu0 0.0
        %1373 = vmatpush1.xpose.msra.mxu0 0.0
        %1374 = vmatprep.subr.mxu0 0.0
        %1375 = vmatpush1.xpose.msra.mxu0 0.0
        %1376 = vmatprep.subr.mxu0 0.0
        %1377 = vmatpush1.xpose.msra.mxu0 0.0
        %1378 = vmatprep.subr.mxu0 0.0
        %1379 = vmatpush1.xpose.msra.mxu0 0.0
        %1380 = vmatprep.subr.mxu0 0.0
        %1381 = vmatpush1.xpose.msra.mxu0 0.0
        %1382 = vmatprep.subr.mxu0 0.0
        %1383 = vmatpush1.xpose.msra.mxu0 0.0
        %1384 = vmatprep.subr.mxu0 0.0
        %1385 = vmatpush1.xpose.msra.mxu0 0.0
        %1386 = vmatprep.mubr.f32.mxu0 0.0
        %1387 = vmatmul.mubr.f32.gmra.mrb[0].mxu0 %v1320
        %v1388 = vpop.f32.mrb[0].mxu0
        %v1389 = vadd.f32 %v557, %v1388
        %v1390 = vpop.f32.mrb[0].mxu0
        %1391 = vdwg.mxu0
        %vm1392 = vcmask 57344
        %v1393 = vsel %vm1392, %v1389, -inf
        %1394 = vmax.xlane.f32.xlu0 %v1393
        %v1395 = vpop.xlane.xlu0 %1394
        %v1396 = vsub.f32 %v1389, %v1395
        %v1397 = vmul.f32 %v1396, 1.442695
        %v1398 = vpow.pop %v1397
        %v1399 = vsel %vm1392, %v1398, 0.0
        %1400 = vadd.xlane.f32.xlu0 %v1399
        %v1401 = vpop.xlane.xlu0 %1400
        %v1402 = vrcp.pop %v1401
        %v1403 = vmul.f32 %v1398, %v1402
        %1404 = vst.msk [vmem:[%s516] sm:$0x1] %vm1392, %v1403
        %v1405 = vlaneseq
        %v1406 = vand.u32 %v1405, 127
        %vm1407 = vcmp.eq.f32.partialorder %v1389, %v1395
        %v1408 = vsel %vm1407, %v1406, 8
        %v1409 = vsel %vm1392, %v1408, 2147483647
        %v1410 = vand.u32 %v1409, 65535
        %v1411 = vshra.s32 %v1409, 16
        %v1412 = vcvt.s32.f32 %v1410
        %v1413 = vcvt.s32.f32 %v1411
        %1414 = vmin.xlane.f32.xlu0 %v1413
        %v1415 = vpop.xlane.xlu0 %1414
        %vm1416 = vcmp.eq.f32.partialorder %v1413, %v1415
        %v1417 = vsel %vm1416, %v1412, inf
        %1418 = vmin.xlane.f32.xlu0 %v1417
        %v1419 = vpop.xlane.xlu0 %1418
        %v1420 = vcvt.f32.s32 %v1419
        %v1421 = vcvt.f32.s32 %v1415
        %v1422 = vshll.u32 %v1421, 16
        %v1423 = vadd.s32 %v1422, %v1420
        %vm1424 = vcmask 0
        %1425 = vst.msk [vmem:[%s546] sm:$0x1] %vm1424, %v1423
        %v1426 = vlog2.pop %v1401
        %v1427 = vmul.f32 %v1426, 0.6931472
        %v1428 = vsub.f32 0.0, %v1427
        %1429 = vst.msk [vmem:[%s549] sm:$0x1] %vm1424, %v1428
        %s1430 = sand.u32 %s312, 1
        %s1431 = scalar_lea.sflag [#allocation5], %s1430
        %s1432 = sand.u32 %s312, 1
        %s1433 = scalar_lea.vmem [#allocation4], %s1432
        %p1434 = scmp.lt.s32.totalorder %s37, 1
        %s1435 = scalar_select %p1434, %s37, 1
        %s1436 = scalar_lea.vmem %s14, %s1435
        %p1437 = scmp.lt.s32.totalorder %s37, 1
        %s1438 = scalar_select %p1437, %s37, 1
        %s1439 = scalar_lea.vmem %s15, %s1438
        %p1440 = scmp.lt.s32.totalorder %s37, 1
        %s1441 = scalar_select %p1440, %s37, 1
        %s1442 = smul.addr %s1441, 8
        %s1443 = scalar_lea.vmem %s16, %s1442
        // Predicated region
        $region69: #{actor_forward.1} parent=67 // pred_check
          %p1444 = pneg %p322
        $region70: #{actor_forward.1} parent=67 // pred_check_branch
          %1446 = sbr.rel (%p1444) target = $region72
        $region71: #{actor_forward.1} parent=67 // pred_region
          %s1448 = ssub.s32 16, 16
          %1449 = vsyncadd %s1431, %s1448
          %s1450 = smul.addr %s37, 16
          %s1451 = scalar_lea.hbm %s13, %s1450
          %s1453 = sshll.u32 %s1433, 4
          %s1454 = int_to_ptr.vmem [resolvable:$true] %s1453
          %1456 = dma.vmem_to_hbm [thread:$0]  %s1454, 16, %s1451, %s1431
        $region72: #{actor_forward.1} parent=67 // pred_fallthru
          _
        // Predicated region
        $region73: #{actor_forward.1} parent=67 // pred_check
          %p1457 = pneg %p348
        $region74: #{actor_forward.1} parent=67 // pred_check_branch
          %1459 = sbr.rel (%p1457) target = $region76
        $region75: #{actor_forward.1} parent=67 // pred_region
          _
        $region76: #{actor_forward.1} parent=67 // pred_fallthru
          _
        // Predicated region
        $region77: #{actor_forward.1} parent=67 // pred_check
          %p1460 = pneg %p374
        $region78: #{actor_forward.1} parent=67 // pred_check_branch
          %1462 = sbr.rel (%p1460) target = $region80
        $region79: #{actor_forward.1} parent=67 // pred_region
          _
        $region80: #{actor_forward.1} parent=67 // pred_fallthru
          _
        // Predicated region
        $region81: #{actor_forward.1} parent=67 // pred_check
          %p1463 = pneg %p400
        $region82: #{actor_forward.1} parent=67 // pred_check_branch
          %1465 = sbr.rel (%p1463) target = $region84
        $region83: #{actor_forward.1} parent=67 // pred_region
          _
        $region84: #{actor_forward.1} parent=67 // pred_fallthru
          _
      $region68: #{actor_forward.1} parent=5 // pred_fallthru
        _
      %p1466 = scmp.le.s32.totalorder 2, %s32
      // Predicated region
      $region85: #{actor_forward.1} parent=5 // pred_check
        %p1467 = pneg %p1466
      $region86: #{actor_forward.1} parent=5 // pred_check_branch
        %1469 = sbr.rel (%p1467) target = $region88
      $region87: #{actor_forward.1} parent=5 // pred_region
        %s1470 = ssub.s32 %s32, 2
        // Predicated region
        $region89: #{actor_forward.1} parent=87 // pred_check
          %p1471 = pneg %p328
        $region90: #{actor_forward.1} parent=87 // pred_check_branch
          %1473 = sbr.rel (%p1471) target = $region92
        $region91: #{actor_forward.1} parent=87 // pred_region
          %s1474 = sand.u32 %s313, 1
          %s1475 = scalar_lea.sflag [#allocation5], %s1474
          %s1476 = sand.u32 %s313, 1
          %s1477 = scalar_lea.vmem [#allocation4], %s1476
          %1478 = dma.done %s1475, 16
        $region92: #{actor_forward.1} parent=87 // pred_fallthru
          _
        // Predicated region
        $region93: #{actor_forward.1} parent=87 // pred_check
          %p1479 = pneg %p354
        $region94: #{actor_forward.1} parent=87 // pred_check_branch
          %1481 = sbr.rel (%p1479) target = $region96
        $region95: #{actor_forward.1} parent=87 // pred_region
          %p1482 = scmp.lt.s32.totalorder %s38, 1
          %s1483 = scalar_select %p1482, %s38, 1
          %s1484 = scalar_lea.vmem %s14, %s1483
        $region96: #{actor_forward.1} parent=87 // pred_fallthru
          _
        // Predicated region
        $region97: #{actor_forward.1} parent=87 // pred_check
          %p1485 = pneg %p380
        $region98: #{actor_forward.1} parent=87 // pred_check_branch
          %1487 = sbr.rel (%p1485) target = $region100
        $region99: #{actor_forward.1} parent=87 // pred_region
          %p1488 = scmp.lt.s32.totalorder %s38, 1
          %s1489 = scalar_select %p1488, %s38, 1
          %s1490 = scalar_lea.vmem %s15, %s1489
        $region100: #{actor_forward.1} parent=87 // pred_fallthru
          _
        // Predicated region
        $region101: #{actor_forward.1} parent=87 // pred_check
          %p1491 = pneg %p406
        $region102: #{actor_forward.1} parent=87 // pred_check_branch
          %1493 = sbr.rel (%p1491) target = $region104
        $region103: #{actor_forward.1} parent=87 // pred_region
          %p1494 = scmp.lt.s32.totalorder %s38, 1
          %s1495 = scalar_select %p1494, %s38, 1
          %s1496 = smul.addr %s1495, 8
          %s1497 = scalar_lea.vmem %s16, %s1496
        $region104: #{actor_forward.1} parent=87 // pred_fallthru
          _
      $region88: #{actor_forward.1} parent=5 // pred_fallthru
        _
    $region6: #{actor_forward.1} parent=1 // loop_footer
      %s36 = sadd.s32 1, %s32
    $region7: #{actor_forward.1} parent=1 // loop_footer_branch
      %31 = sbr.rel target = $region3
    $region8: #{actor_forward.1} parent=1 // loop_exit
      _
    %1498 = vsyncpa [#allocation5], 1
    %s1499 = scalar_lea.sflag [#allocation5], 1
    %1500 = vsyncpa %s1499, 1

</llo_original>
